<compile_context>
chip_gen: v5e
topology: v5e:2x2
jax: 0.10.0
libtpu: 0.0.40
codegen_flags: <defaults>
</compile_context>

<pallas_src>
import functools

import jax
import jax.numpy as jnp
from jax.experimental import pallas as pl
from jax.experimental.pallas import tpu as pltpu

BN_EPS = 1e-5
LEAKY_SLOPE = 0.2


def _round_up(x, m):
    return (x + m - 1) // m * m


def _op_order(layers):
    """Deterministic operator ordering: descending layer count, then index.

    With this ordering the set of operators still active at hidden layer t is
    always a *prefix*, so the fused chain only ever slices a leading lane
    range when operators have different layer counts.
    """
    return tuple(sorted(range(3), key=lambda j: (-layers[j], j)))


# ----------------------------------------------------------------------------
# Fused kernel
# ----------------------------------------------------------------------------
def _make_fused_kernel(N, D, L, layers):
    """layers = (S_layers, I_layers, U_layers); latents already padded to L."""
    order = _op_order(layers)
    layers_sorted = [layers[j] for j in order]
    max_layers = max(layers)
    active = [sum(1 for l in layers_sorted if l > t) for t in range(max_layers)]
    threeL = 3 * L
    Wout = _round_up(3 * D, 128)        # lane-padded fused output width
    pS, pI, pU = order.index(0), order.index(1), order.index(2)

    def leaky(x):
        return jnp.where(x > 0, x, LEAKY_SLOPE * x)

    def kernel(a_ref, b_ref, w_in0_ref, w_in_bd_ref, w_h_ref, biases_ref,
               w_out_ref, o_ref):
        a = a_ref[...]
        b = b_ref[...]

        b_in = biases_ref[0:1, :threeL]
        b_out = biases_ref[max_layers + 1:max_layers + 2, :Wout]
        w_out = w_out_ref[...]

        def chain(x, w_in, needed_pos=None):
            """One fused (lane-stacked) SetOpBlock_v2 pass for all 3 operators."""
            h = leaky(jnp.dot(x, w_in, preferred_element_type=jnp.float32) + b_in)
            for t in range(max_layers):
                k = active[t]
                if needed_pos is not None and k <= needed_pos:
                    continue        # this layer only feeds lanes we discard
                kl = k * L
                w_t = w_h_ref[t]
                b_t = biases_ref[1 + t:2 + t, :kl]
                if kl < threeL:     # only a prefix of operators is still active
                    g = leaky(jnp.dot(h[:, :kl], w_t[:kl, :kl],
                                      preferred_element_type=jnp.float32) + b_t)
                    h = jnp.concatenate([g, h[:, kl:]], axis=1)
                else:
                    h = leaky(jnp.dot(h, w_t,
                                      preferred_element_type=jnp.float32) + b_t)
            return jnp.dot(h, w_out, preferred_element_type=jnp.float32) + b_out

        lane = lambda p: slice(p * D, (p + 1) * D)

        # ---- level 0: S/I/U on (a,b) and (b,a); all share the same rows ----
        pair = jnp.concatenate(
            [jnp.concatenate([a, b], axis=1),
             jnp.concatenate([b, a], axis=1)], axis=0)            # (2N, 2D)
        y0 = chain(pair, w_in0_ref[...])                          # (2N, Wout)
        o_ref[0:2 * N, :] = y0

        aSb, bSa = y0[:N, lane(pS)], y0[N:, lane(pS)]
        aIb, bIa = y0[:N, lane(pI)], y0[N:, lane(pI)]
        aUb, bUa = y0[:N, lane(pU)], y0[N:, lane(pU)]

        # ---- level 1: all 10 block calls fused (6 row groups x 3 lane groups)
        z4 = jnp.zeros((4 * N, D), jnp.float32)
        ba = jnp.concatenate([b, a], axis=0)                      # reused 3x
        ba6 = jnp.concatenate([ba, z4], axis=0)
        ab = jnp.concatenate([a, b], axis=0)
        cols = {
            # op 0 (S): 6 real (first, second) operand pairs
            0: (jnp.concatenate([aSb, bSa, ab, ab], axis=0),
                jnp.concatenate([ba, bIa, aIb, aIb, bIa], axis=0)),
            # op 1 (I): 2 real pairs, 4 don't-care row groups
            1: (jnp.concatenate([aIb, bIa, z4], axis=0), ba6),
            # op 2 (U): 2 real pairs, 4 don't-care row groups
            2: (jnp.concatenate([aUb, bUa, z4], axis=0), ba6),
        }
        pieces = []
        for p in range(3):
            f, s = cols[order[p]]
            pieces += [f, s]
        x1 = jnp.concatenate(pieces, axis=1)                      # (6N, 6D)
        y1 = chain(x1, w_in_bd_ref[...])                          # (6N, Wout)
        o_ref[2 * N:8 * N, :] = y1

        aSbIa = y1[2 * N:3 * N, lane(pS)]
        bSaIb = y1[3 * N:4 * N, lane(pS)]

        # ---- level 2: U(a_S_b_I_a, a_I_b) and U(b_S_a_I_b, b_I_a) ----------
        z2 = jnp.zeros((2 * N, D), jnp.float32)
        u_first = jnp.concatenate([aSbIa, bSaIb], axis=0)
        u_second = jnp.concatenate([aIb, bIa], axis=0)
        pieces2 = []
        for p in range(3):
            pieces2 += [u_first, u_second] if order[p] == 2 else [z2, z2]
        x2 = jnp.concatenate(pieces2, axis=1)                     # (2N, 6D)
        y2 = chain(x2, w_in_bd_ref[...], needed_pos=pU)           # (2N, Wout)
        o_ref[8 * N:10 * N, :] = y2

    return kernel


# ----------------------------------------------------------------------------
# Wrapper
# ----------------------------------------------------------------------------
def setops_forward(params, a, b):
    """Fused SetOpsModule_v3 forward. Returns the 18-tuple of (N, D) outputs."""
    N, D = a.shape
    threeL = int(params["w_h"].shape[1])
    L = threeL // 3
    Wout = int(params["w_out"].shape[1])
    layers = tuple(int(s) - 1 for s in params["layers_marker"].shape)
    order = _op_order(layers)
    layers_sorted = [layers[j] for j in order]
    max_layers = max(layers)
    active = [sum(1 for l in layers_sorted if l > t) for t in range(max_layers)]

    kernel = _make_fused_kernel(N, D, L, layers)

    args = (a, b, params["w_in0"], params["w_in_bd"], params["w_h"],
            params["biases"], params["w_out"])

    # Advisory cost estimate: a handful of small dependent matmuls, operands
    # fully VMEM-resident.
    flops = 0
    for rows, kin in ((2 * N, 2 * D), (6 * N, 6 * D), (2 * N, 6 * D)):
        flops += 2 * rows * kin * threeL
        for t in range(max_layers):
            kl = active[t] * L
            flops += 2 * rows * kl * kl
        flops += 2 * rows * threeL * Wout
    bytes_accessed = 4 * (a.size + b.size + 10 * N * Wout
                          + sum(int(params[k].size) for k in
                                ("w_in0", "w_in_bd", "w_h", "biases", "w_out")))

    slab = pl.pallas_call(
        kernel,
        out_shape=jax.ShapeDtypeStruct((10 * N, Wout), jnp.float32),
        in_specs=[pl.BlockSpec(memory_space=pltpu.MemorySpace.VMEM)] * len(args),
        out_specs=pl.BlockSpec(memory_space=pltpu.MemorySpace.VMEM),
        cost_estimate=pl.CostEstimate(flops=flops, transcendentals=0,
                                      bytes_accessed=bytes_accessed),
    )(*args)

    pS, pI, pU = order.index(0), order.index(1), order.index(2)
    lane = lambda p: slice(p * D, (p + 1) * D)
    y0, y1, y2 = slab[:2 * N], slab[2 * N:8 * N], slab[8 * N:]
    grp = lambda i: y1[i * N:(i + 1) * N]

    a_S_b, b_S_a = y0[:N, lane(pS)], y0[N:, lane(pS)]
    a_I_b, b_I_a = y0[:N, lane(pI)], y0[N:, lane(pI)]
    a_U_b, b_U_a = y0[:N, lane(pU)], y0[N:, lane(pU)]
    a_S_b_b, b_S_a_a = grp(0)[:, lane(pS)], grp(1)[:, lane(pS)]
    a_S_b_I_a, b_S_a_I_b = grp(2)[:, lane(pS)], grp(3)[:, lane(pS)]
    a_S_a_I_b, b_S_b_I_a = grp(4)[:, lane(pS)], grp(5)[:, lane(pS)]
    a_I_b_b, b_I_a_a = grp(0)[:, lane(pI)], grp(1)[:, lane(pI)]
    a_U_b_b, b_U_a_a = grp(0)[:, lane(pU)], grp(1)[:, lane(pU)]
    out_a, out_b = y2[:N, lane(pU)], y2[N:, lane(pU)]

    return (out_a, out_b, a_S_b, b_S_a, a_U_b, b_U_a, a_I_b, b_I_a,
            a_S_b_b, b_S_a_a, a_I_b_b, b_I_a_a, a_U_b_b, b_U_a_a,
            a_S_b_I_a, b_S_a_I_b, a_S_a_I_b, b_S_b_I_a)


# ----------------------------------------------------------------------------
# Parameter construction (PyTorch-style init) + host-side packing
# ----------------------------------------------------------------------------
def _uniform(key, fan_in, shape):
    bound = 1.0 / (fan_in ** 0.5)
    return jax.random.uniform(key, shape, jnp.float32, -bound, bound)


def init_block_params(key, input_dim, latent_dim, layers_num):
    """Raw (un-folded) SetOpBlock_v2 parameters; weights stored as [in, out]."""
    ks = jax.random.split(key, 4 + 2 * layers_num)
    p = {
        "w_in": _uniform(ks[0], 2 * input_dim, (2 * input_dim, latent_dim)),
        "b_in": _uniform(ks[1], 2 * input_dim, (1, latent_dim)),
        # BatchNorm1d defaults: gamma=1, beta=0, running_mean=0, running_var=1.
        "bn_g": jnp.ones((layers_num, latent_dim), jnp.float32),
        "bn_b": jnp.zeros((layers_num, latent_dim), jnp.float32),
        "bn_m": jnp.zeros((layers_num, latent_dim), jnp.float32),
        "bn_v": jnp.ones((layers_num, latent_dim), jnp.float32),
        "w_out": _uniform(ks[2], latent_dim, (latent_dim, input_dim)),
        "b_out": _uniform(ks[3], latent_dim, (1, input_dim)),
    }
    w_h, b_h = [], []
    for i in range(layers_num):
        w_h.append(_uniform(ks[4 + 2 * i], latent_dim, (latent_dim, latent_dim)))
        b_h.append(_uniform(ks[5 + 2 * i], latent_dim, (latent_dim,)))
    p["w_h"] = jnp.stack(w_h, axis=0)   # (K, L, L)
    p["b_h"] = jnp.stack(b_h, axis=0)   # (K, L)
    return p


def _block_diag(blocks):
    rows = sum(int(blk.shape[0]) for blk in blocks)
    cols = sum(int(blk.shape[1]) for blk in blocks)
    out = jnp.zeros((rows, cols), jnp.float32)
    r = c = 0
    for blk in blocks:
        out = out.at[r:r + blk.shape[0], c:c + blk.shape[1]].set(blk)
        r += int(blk.shape[0])
        c += int(blk.shape[1])
    return out


def pack_setops_params(raw):
    """Fold eval-mode BN, pad latents to a common width, build fused slabs."""
    ops = ("S", "I", "U")
    D = int(raw["S"]["w_out"].shape[1])
    layers = tuple(int(raw[o]["w_h"].shape[0]) for o in ops)
    latents = tuple(int(raw[o]["w_out"].shape[0]) for o in ops)
    L = max(latents)
    order = _op_order(layers)
    layers_sorted = [layers[j] for j in order]
    max_layers = max(layers)
    active = [sum(1 for l in layers_sorted if l > t) for t in range(max_layers)]
    threeL = 3 * L
    Wout = _round_up(3 * D, 128)
    BW = max(threeL, Wout)

    folded = {}
    for idx, o in enumerate(ops):
        p = raw[o]
        padL = L - latents[idx]
        w_h_list, b_h_list = [], []
        for i in range(layers[idx]):
            scale = p["bn_g"][i] * jax.lax.rsqrt(p["bn_v"][i] + BN_EPS)
            w_f = scale[:, None] * p["w_h"][i]
            b_f = (p["bn_b"][i] - p["bn_m"][i] * scale) @ p["w_h"][i] + p["b_h"][i]
            w_h_list.append(jnp.pad(w_f, ((0, padL), (0, padL))))
            b_h_list.append(jnp.pad(b_f, (0, padL)))
        folded[idx] = {
            "w_in": jnp.pad(p["w_in"], ((0, 0), (0, padL))),       # (2D, L)
            "b_in": jnp.pad(p["b_in"].reshape(-1), (0, padL)),     # (L,)
            "w_h": w_h_list, "b_h": b_h_list,
            "w_out": jnp.pad(p["w_out"], ((0, padL), (0, 0))),     # (L, D)
            "b_out": p["b_out"].reshape(-1),                       # (D,)
        }

    srt = [folded[j] for j in order]

    w_in0 = jnp.concatenate([f["w_in"] for f in srt], axis=1)      # (2D, 3L)
    w_in_bd = _block_diag([f["w_in"] for f in srt])                # (6D, 3L)
    b_in = jnp.pad(jnp.concatenate([f["b_in"] for f in srt]), (0, BW - threeL))

    w_h_rows, b_h_rows = [], []
    for t in range(max_layers):
        k = active[t]
        bd = _block_diag([srt[p]["w_h"][t] for p in range(k)])     # (kL, kL)
        w_h_rows.append(jnp.zeros((threeL, threeL), jnp.float32)
                        .at[:k * L, :k * L].set(bd))
        bh = jnp.concatenate([srt[p]["b_h"][t] for p in range(k)])
        b_h_rows.append(jnp.pad(bh, (0, BW - k * L)))
    w_h_all = (jnp.stack(w_h_rows) if max_layers > 0
               else jnp.zeros((1, threeL, threeL), jnp.float32))

    w_out = jnp.pad(_block_diag([f["w_out"] for f in srt]),
                    ((0, 0), (0, Wout - 3 * D)))                   # (3L, Wout)
    b_out = jnp.pad(jnp.concatenate([f["b_out"] for f in srt]), (0, BW - 3 * D))

    biases = jnp.stack([b_in] + b_h_rows + [b_out], axis=0)        # (ml+2, BW)

    return {
        "w_in0": w_in0,
        "w_in_bd": w_in_bd,
        "w_h": w_h_all,
        "biases": biases,
        "w_out": w_out,
        # Static layer counts recoverable from this marker's *shape* (keeps the
        # jitted pytree free of python-int leaves).  Never passed to the kernel.
        "layers_marker": jnp.zeros((layers[0] + 1, layers[1] + 1, layers[2] + 1),
                                   jnp.int8),
    }


# ----------------------------------------------------------------------------
# Pure-JAX eval-mode reference (un-folded BN) for a numerical self-check
# ----------------------------------------------------------------------------
def _block_ref(a, b, p):
    hp = jax.lax.Precision.HIGHEST
    h = jnp.dot(jnp.concatenate([a, b], axis=1), p["w_in"], precision=hp) + p["b_in"]
    h = jnp.where(h > 0, h, LEAKY_SLOPE * h)
    for i in range(p["w_h"].shape[0]):
        s = p["bn_g"][i] * jax.lax.rsqrt(p["bn_v"][i] + BN_EPS)
        h = (h - p["bn_m"][i]) * s + p["bn_b"][i]
        h = jnp.dot(h, p["w_h"][i], precision=hp) + p["b_h"][i]
        h = jnp.where(h > 0, h, LEAKY_SLOPE * h)
    return jnp.dot(h, p["w_out"], precision=hp) + p["b_out"]


def setops_forward_ref(params, a, b):
    S = lambda x, y: _block_ref(x, y, params["S"])
    I = lambda x, y: _block_ref(x, y, params["I"])
    U = lambda x, y: _block_ref(x, y, params["U"])
    a_S_b = S(a, b); b_S_a = S(b, a)
    a_S_b_b = S(a_S_b, b); b_S_a_a = S(b_S_a, a)
    a_I_b = I(a, b); b_I_a = I(b, a)
    a_S_b_I_a = S(a, b_I_a); b_S_a_I_b = S(b, a_I_b)
    a_S_a_I_b = S(a, a_I_b); b_S_b_I_a = S(b, b_I_a)
    a_I_b_b = I(a_I_b, b); b_I_a_a = I(b_I_a, a)
    a_U_b = U(a, b); b_U_a = U(b, a)
    a_U_b_b = U(a_U_b, b); b_U_a_a = U(b_U_a, a)
    out_a = U(a_S_b_I_a, a_I_b); out_b = U(b_S_a_I_b, b_I_a)
    return (out_a, out_b, a_S_b, b_S_a, a_U_b, b_U_a, a_I_b, b_I_a,
            a_S_b_b, b_S_a_a, a_I_b_b, b_I_a_a, a_U_b_b, b_U_a_a,
            a_S_b_I_a, b_S_a_I_b, a_S_a_I_b, b_S_b_I_a)


# ----------------------------------------------------------------------------
if __name__ == "__main__":
    batch = 8
    input_dim = 32
    S_latent, S_layers = 64, 3
    I_latent, I_layers = 48, 2
    U_latent, U_layers = 64, 2

    key = jax.random.PRNGKey(0)
    k_params, k_a, k_b = jax.random.split(key, 3)
    kS, kI, kU = jax.random.split(k_params, 3)

    raw_params = {
        "S": init_block_params(kS, input_dim, S_latent, S_layers),
        "I": init_block_params(kI, input_dim, I_latent, I_layers),
        "U": init_block_params(kU, input_dim, U_latent, U_layers),
    }
    packed_params = pack_setops_params(raw_params)

    a = jax.random.normal(k_a, (batch, input_dim), jnp.float32)
    b = jax.random.normal(k_b, (batch, input_dim), jnp.float32)

    fwd = jax.jit(setops_forward)
    outs = jax.block_until_ready(fwd(packed_params, a, b))

    assert len(outs) == 18
    refs = setops_forward_ref(raw_params, a, b)
    for o, r in zip(outs, refs):
        assert o.shape == (batch, input_dim)
        assert o.dtype == jnp.float32
        assert jnp.allclose(o, r, rtol=2e-3, atol=2e-3), \
            float(jnp.max(jnp.abs(o - r)))

    print("KERNEL_OK")
</pallas_src>

<mosaic_0001>
module attributes {stable_mosaic.version = 11 : i64} {
  func.func @kernel(%arg0: memref<8x32xf32, #tpu.memory_space<vmem>>, %arg1: memref<8x32xf32, #tpu.memory_space<vmem>>, %arg2: memref<64x192xf32, #tpu.memory_space<vmem>>, %arg3: memref<192x192xf32, #tpu.memory_space<vmem>>, %arg4: memref<3x192x192xf32, #tpu.memory_space<vmem>>, %arg5: memref<5x192xf32, #tpu.memory_space<vmem>>, %arg6: memref<192x128xf32, #tpu.memory_space<vmem>>, %arg7: memref<80x128xf32, #tpu.memory_space<vmem>>) attributes {dimension_semantics = [], scalar_prefetch = 0 : i64, scratch_operands = 0 : i64, tpu.core_type = #tpu.core_type<tc>} {
    %c0 = arith.constant 0 : index
    %c0_0 = arith.constant 0 : index
    %0 = vector.load %arg0[%c0, %c0_0] : memref<8x32xf32, #tpu.memory_space<vmem>>, vector<8x32xf32>
    %c0_1 = arith.constant 0 : index
    %c0_2 = arith.constant 0 : index
    %1 = vector.load %arg1[%c0_1, %c0_2] : memref<8x32xf32, #tpu.memory_space<vmem>>, vector<8x32xf32>
    %c0_3 = arith.constant 0 : index
    %c0_4 = arith.constant 0 : index
    %2 = vector.load %arg5[%c0_3, %c0_4] : memref<5x192xf32, #tpu.memory_space<vmem>>, vector<1x192xf32>
    %c4 = arith.constant 4 : index
    %c0_5 = arith.constant 0 : index
    %3 = vector.load %arg5[%c4, %c0_5] : memref<5x192xf32, #tpu.memory_space<vmem>>, vector<1x128xf32>
    %c0_6 = arith.constant 0 : index
    %c0_7 = arith.constant 0 : index
    %4 = vector.load %arg6[%c0_6, %c0_7] : memref<192x128xf32, #tpu.memory_space<vmem>>, vector<192x128xf32>
    %5 = tpu.concatenate %0, %1 in 1 : vector<8x32xf32>, vector<8x32xf32> -> vector<8x64xf32>
    %6 = tpu.concatenate %1, %0 in 1 : vector<8x32xf32>, vector<8x32xf32> -> vector<8x64xf32>
    %7 = tpu.concatenate %5, %6 in 0 : vector<8x64xf32>, vector<8x64xf32> -> vector<16x64xf32>
    %c0_8 = arith.constant 0 : index
    %c0_9 = arith.constant 0 : index
    %8 = vector.load %arg2[%c0_8, %c0_9] : memref<64x192xf32, #tpu.memory_space<vmem>>, vector<64x192xf32>
    %cst = arith.constant dense<0.000000e+00> : vector<16x192xf32>
    %9 = tpu.matmul %7, %8, %cst {dimension_numbers = #tpu.dot_dimension_numbers<[1], [0], [0], [1], [0, 0, 1, 1], [], []>} : vector<16x64xf32>, vector<64x192xf32>, vector<16x192xf32> -> vector<16x192xf32>
    %10 = vector.broadcast %2 : vector<1x192xf32> to vector<16x192xf32>
    %11 = arith.addf %9, %10 : vector<16x192xf32>
    %cst_10 = arith.constant 0.000000e+00 : f32
    %12 = vector.broadcast %cst_10 : f32 to vector<16x192xf32>
    %13 = arith.cmpf ogt, %11, %12 : vector<16x192xf32>
    %cst_11 = arith.constant 2.000000e-01 : f32
    %14 = vector.broadcast %cst_11 : f32 to vector<16x192xf32>
    %15 = arith.mulf %14, %11 : vector<16x192xf32>
    %16 = arith.select %13, %11, %15 : vector<16x192xi1>, vector<16x192xf32>
    %c0_12 = arith.constant 0 : index
    %c0_13 = arith.constant 0 : index
    %c0_14 = arith.constant 0 : index
    %17 = vector.load %arg4[%c0_12, %c0_13, %c0_14] : memref<3x192x192xf32, #tpu.memory_space<vmem>>, vector<1x192x192xf32>
    %18 = vector.shape_cast %17 : vector<1x192x192xf32> to vector<192x192xf32>
    %c1 = arith.constant 1 : index
    %c0_15 = arith.constant 0 : index
    %19 = vector.load %arg5[%c1, %c0_15] : memref<5x192xf32, #tpu.memory_space<vmem>>, vector<1x192xf32>
    %cst_16 = arith.constant dense<0.000000e+00> : vector<16x192xf32>
    %20 = tpu.matmul %16, %18, %cst_16 {dimension_numbers = #tpu.dot_dimension_numbers<[1], [0], [0], [1], [0, 0, 1, 1], [], []>} : vector<16x192xf32>, vector<192x192xf32>, vector<16x192xf32> -> vector<16x192xf32>
    %21 = vector.broadcast %19 : vector<1x192xf32> to vector<16x192xf32>
    %22 = arith.addf %20, %21 : vector<16x192xf32>
    %cst_17 = arith.constant 0.000000e+00 : f32
    %23 = vector.broadcast %cst_17 : f32 to vector<16x192xf32>
    %24 = arith.cmpf ogt, %22, %23 : vector<16x192xf32>
    %cst_18 = arith.constant 2.000000e-01 : f32
    %25 = vector.broadcast %cst_18 : f32 to vector<16x192xf32>
    %26 = arith.mulf %25, %22 : vector<16x192xf32>
    %27 = arith.select %24, %22, %26 : vector<16x192xi1>, vector<16x192xf32>
    %c1_19 = arith.constant 1 : index
    %c0_20 = arith.constant 0 : index
    %c0_21 = arith.constant 0 : index
    %28 = vector.load %arg4[%c1_19, %c0_20, %c0_21] : memref<3x192x192xf32, #tpu.memory_space<vmem>>, vector<1x192x192xf32>
    %29 = vector.shape_cast %28 : vector<1x192x192xf32> to vector<192x192xf32>
    %c2 = arith.constant 2 : index
    %c0_22 = arith.constant 0 : index
    %30 = vector.load %arg5[%c2, %c0_22] : memref<5x192xf32, #tpu.memory_space<vmem>>, vector<1x192xf32>
    %cst_23 = arith.constant dense<0.000000e+00> : vector<16x192xf32>
    %31 = tpu.matmul %27, %29, %cst_23 {dimension_numbers = #tpu.dot_dimension_numbers<[1], [0], [0], [1], [0, 0, 1, 1], [], []>} : vector<16x192xf32>, vector<192x192xf32>, vector<16x192xf32> -> vector<16x192xf32>
    %32 = vector.broadcast %30 : vector<1x192xf32> to vector<16x192xf32>
    %33 = arith.addf %31, %32 : vector<16x192xf32>
    %cst_24 = arith.constant 0.000000e+00 : f32
    %34 = vector.broadcast %cst_24 : f32 to vector<16x192xf32>
    %35 = arith.cmpf ogt, %33, %34 : vector<16x192xf32>
    %cst_25 = arith.constant 2.000000e-01 : f32
    %36 = vector.broadcast %cst_25 : f32 to vector<16x192xf32>
    %37 = arith.mulf %36, %33 : vector<16x192xf32>
    %38 = arith.select %35, %33, %37 : vector<16x192xi1>, vector<16x192xf32>
    %c2_26 = arith.constant 2 : index
    %c0_27 = arith.constant 0 : index
    %c0_28 = arith.constant 0 : index
    %39 = vector.load %arg4[%c2_26, %c0_27, %c0_28] : memref<3x192x192xf32, #tpu.memory_space<vmem>>, vector<1x192x192xf32>
    %40 = vector.shape_cast %39 : vector<1x192x192xf32> to vector<192x192xf32>
    %c3 = arith.constant 3 : index
    %c0_29 = arith.constant 0 : index
    %41 = vector.load %arg5[%c3, %c0_29] : memref<5x192xf32, #tpu.memory_space<vmem>>, vector<1x64xf32>
    %42 = vector.extract_strided_slice %38 {offsets = [0, 0], sizes = [16, 64], strides = [1, 1]} : vector<16x192xf32> to vector<16x64xf32>
    %43 = vector.extract_strided_slice %40 {offsets = [0, 0], sizes = [64, 64], strides = [1, 1]} : vector<192x192xf32> to vector<64x64xf32>
    %cst_30 = arith.constant dense<0.000000e+00> : vector<16x64xf32>
    %44 = tpu.matmul %42, %43, %cst_30 {dimension_numbers = #tpu.dot_dimension_numbers<[1], [0], [0], [1], [0, 0, 1, 1], [], []>} : vector<16x64xf32>, vector<64x64xf32>, vector<16x64xf32> -> vector<16x64xf32>
    %45 = vector.broadcast %41 : vector<1x64xf32> to vector<16x64xf32>
    %46 = arith.addf %44, %45 : vector<16x64xf32>
    %cst_31 = arith.constant 0.000000e+00 : f32
    %47 = vector.broadcast %cst_31 : f32 to vector<16x64xf32>
    %48 = arith.cmpf ogt, %46, %47 : vector<16x64xf32>
    %cst_32 = arith.constant 2.000000e-01 : f32
    %49 = vector.broadcast %cst_32 : f32 to vector<16x64xf32>
    %50 = arith.mulf %49, %46 : vector<16x64xf32>
    %51 = arith.select %48, %46, %50 : vector<16x64xi1>, vector<16x64xf32>
    %52 = vector.extract_strided_slice %38 {offsets = [0, 64], sizes = [16, 128], strides = [1, 1]} : vector<16x192xf32> to vector<16x128xf32>
    %53 = tpu.concatenate %51, %52 in 1 : vector<16x64xf32>, vector<16x128xf32> -> vector<16x192xf32>
    %cst_33 = arith.constant dense<0.000000e+00> : vector<16x128xf32>
    %54 = tpu.matmul %53, %4, %cst_33 {dimension_numbers = #tpu.dot_dimension_numbers<[1], [0], [0], [1], [0, 0, 1, 1], [], []>} : vector<16x192xf32>, vector<192x128xf32>, vector<16x128xf32> -> vector<16x128xf32>
    %55 = vector.broadcast %3 : vector<1x128xf32> to vector<16x128xf32>
    %56 = arith.addf %54, %55 : vector<16x128xf32>
    %c0_34 = arith.constant 0 : index
    %c0_35 = arith.constant 0 : index
    %57 = vector.load %arg7[%c0_34, %c0_35] : memref<80x128xf32, #tpu.memory_space<vmem>>, vector<16x128xf32>
    tpu.vector_store %arg7[%c0_34, %c0_35], %56 {strides = array<i32>} : memref<80x128xf32, #tpu.memory_space<vmem>>, vector<16x128xf32>,
    %58 = vector.extract_strided_slice %56 {offsets = [0, 0], sizes = [8, 32], strides = [1, 1]} : vector<16x128xf32> to vector<8x32xf32>
    %59 = vector.extract_strided_slice %56 {offsets = [8, 0], sizes = [8, 32], strides = [1, 1]} : vector<16x128xf32> to vector<8x32xf32>
    %60 = vector.extract_strided_slice %56 {offsets = [0, 32], sizes = [8, 32], strides = [1, 1]} : vector<16x128xf32> to vector<8x32xf32>
    %61 = vector.extract_strided_slice %56 {offsets = [8, 32], sizes = [8, 32], strides = [1, 1]} : vector<16x128xf32> to vector<8x32xf32>
    %62 = vector.extract_strided_slice %56 {offsets = [0, 64], sizes = [8, 32], strides = [1, 1]} : vector<16x128xf32> to vector<8x32xf32>
    %63 = vector.extract_strided_slice %56 {offsets = [8, 64], sizes = [8, 32], strides = [1, 1]} : vector<16x128xf32> to vector<8x32xf32>
    %cst_36 = arith.constant 0.000000e+00 : f32
    %64 = vector.broadcast %cst_36 : f32 to vector<32x32xf32>
    %65 = tpu.concatenate %1, %0 in 0 : vector<8x32xf32>, vector<8x32xf32> -> vector<16x32xf32>
    %66 = tpu.concatenate %65, %64 in 0 : vector<16x32xf32>, vector<32x32xf32> -> vector<48x32xf32>
    %67 = tpu.concatenate %0, %1 in 0 : vector<8x32xf32>, vector<8x32xf32> -> vector<16x32xf32>
    %68 = tpu.concatenate %58, %59, %67, %67 in 0 : vector<8x32xf32>, vector<8x32xf32>, vector<16x32xf32>, vector<16x32xf32> -> vector<48x32xf32>
    %69 = tpu.concatenate %65, %61, %60, %60, %61 in 0 : vector<16x32xf32>, vector<8x32xf32>, vector<8x32xf32>, vector<8x32xf32>, vector<8x32xf32> -> vector<48x32xf32>
    %70 = tpu.concatenate %60, %61, %64 in 0 : vector<8x32xf32>, vector<8x32xf32>, vector<32x32xf32> -> vector<48x32xf32>
    %71 = tpu.concatenate %62, %63, %64 in 0 : vector<8x32xf32>, vector<8x32xf32>, vector<32x32xf32> -> vector<48x32xf32>
    %72 = tpu.concatenate %68, %69, %70, %66, %71, %66 in 1 : vector<48x32xf32>, vector<48x32xf32>, vector<48x32xf32>, vector<48x32xf32>, vector<48x32xf32>, vector<48x32xf32> -> vector<48x192xf32>
    %c0_37 = arith.constant 0 : index
    %c0_38 = arith.constant 0 : index
    %73 = vector.load %arg3[%c0_37, %c0_38] : memref<192x192xf32, #tpu.memory_space<vmem>>, vector<192x192xf32>
    %cst_39 = arith.constant dense<0.000000e+00> : vector<48x192xf32>
    %74 = tpu.matmul %72, %73, %cst_39 {dimension_numbers = #tpu.dot_dimension_numbers<[1], [0], [0], [1], [0, 0, 1, 1], [], []>} : vector<48x192xf32>, vector<192x192xf32>, vector<48x192xf32> -> vector<48x192xf32>
    %75 = vector.broadcast %2 : vector<1x192xf32> to vector<48x192xf32>
    %76 = arith.addf %74, %75 : vector<48x192xf32>
    %cst_40 = arith.constant 0.000000e+00 : f32
    %77 = vector.broadcast %cst_40 : f32 to vector<48x192xf32>
    %78 = arith.cmpf ogt, %76, %77 : vector<48x192xf32>
    %cst_41 = arith.constant 2.000000e-01 : f32
    %79 = vector.broadcast %cst_41 : f32 to vector<48x192xf32>
    %80 = arith.mulf %79, %76 : vector<48x192xf32>
    %81 = arith.select %78, %76, %80 : vector<48x192xi1>, vector<48x192xf32>
    %c0_42 = arith.constant 0 : index
    %c0_43 = arith.constant 0 : index
    %c0_44 = arith.constant 0 : index
    %82 = vector.load %arg4[%c0_42, %c0_43, %c0_44] : memref<3x192x192xf32, #tpu.memory_space<vmem>>, vector<1x192x192xf32>
    %83 = vector.shape_cast %82 : vector<1x192x192xf32> to vector<192x192xf32>
    %c1_45 = arith.constant 1 : index
    %c0_46 = arith.constant 0 : index
    %84 = vector.load %arg5[%c1_45, %c0_46] : memref<5x192xf32, #tpu.memory_space<vmem>>, vector<1x192xf32>
    %cst_47 = arith.constant dense<0.000000e+00> : vector<48x192xf32>
    %85 = tpu.matmul %81, %83, %cst_47 {dimension_numbers = #tpu.dot_dimension_numbers<[1], [0], [0], [1], [0, 0, 1, 1], [], []>} : vector<48x192xf32>, vector<192x192xf32>, vector<48x192xf32> -> vector<48x192xf32>
    %86 = vector.broadcast %84 : vector<1x192xf32> to vector<48x192xf32>
    %87 = arith.addf %85, %86 : vector<48x192xf32>
    %cst_48 = arith.constant 0.000000e+00 : f32
    %88 = vector.broadcast %cst_48 : f32 to vector<48x192xf32>
    %89 = arith.cmpf ogt, %87, %88 : vector<48x192xf32>
    %cst_49 = arith.constant 2.000000e-01 : f32
    %90 = vector.broadcast %cst_49 : f32 to vector<48x192xf32>
    %91 = arith.mulf %90, %87 : vector<48x192xf32>
    %92 = arith.select %89, %87, %91 : vector<48x192xi1>, vector<48x192xf32>
    %c1_50 = arith.constant 1 : index
    %c0_51 = arith.constant 0 : index
    %c0_52 = arith.constant 0 : index
    %93 = vector.load %arg4[%c1_50, %c0_51, %c0_52] : memref<3x192x192xf32, #tpu.memory_space<vmem>>, vector<1x192x192xf32>
    %94 = vector.shape_cast %93 : vector<1x192x192xf32> to vector<192x192xf32>
    %c2_53 = arith.constant 2 : index
    %c0_54 = arith.constant 0 : index
    %95 = vector.load %arg5[%c2_53, %c0_54] : memref<5x192xf32, #tpu.memory_space<vmem>>, vector<1x192xf32>
    %cst_55 = arith.constant dense<0.000000e+00> : vector<48x192xf32>
    %96 = tpu.matmul %92, %94, %cst_55 {dimension_numbers = #tpu.dot_dimension_numbers<[1], [0], [0], [1], [0, 0, 1, 1], [], []>} : vector<48x192xf32>, vector<192x192xf32>, vector<48x192xf32> -> vector<48x192xf32>
    %97 = vector.broadcast %95 : vector<1x192xf32> to vector<48x192xf32>
    %98 = arith.addf %96, %97 : vector<48x192xf32>
    %cst_56 = arith.constant 0.000000e+00 : f32
    %99 = vector.broadcast %cst_56 : f32 to vector<48x192xf32>
    %100 = arith.cmpf ogt, %98, %99 : vector<48x192xf32>
    %cst_57 = arith.constant 2.000000e-01 : f32
    %101 = vector.broadcast %cst_57 : f32 to vector<48x192xf32>
    %102 = arith.mulf %101, %98 : vector<48x192xf32>
    %103 = arith.select %100, %98, %102 : vector<48x192xi1>, vector<48x192xf32>
    %c2_58 = arith.constant 2 : index
    %c0_59 = arith.constant 0 : index
    %c0_60 = arith.constant 0 : index
    %104 = vector.load %arg4[%c2_58, %c0_59, %c0_60] : memref<3x192x192xf32, #tpu.memory_space<vmem>>, vector<1x192x192xf32>
    %105 = vector.shape_cast %104 : vector<1x192x192xf32> to vector<192x192xf32>
    %c3_61 = arith.constant 3 : index
    %c0_62 = arith.constant 0 : index
    %106 = vector.load %arg5[%c3_61, %c0_62] : memref<5x192xf32, #tpu.memory_space<vmem>>, vector<1x64xf32>
    %107 = vector.extract_strided_slice %103 {offsets = [0, 0], sizes = [48, 64], strides = [1, 1]} : vector<48x192xf32> to vector<48x64xf32>
    %108 = vector.extract_strided_slice %105 {offsets = [0, 0], sizes = [64, 64], strides = [1, 1]} : vector<192x192xf32> to vector<64x64xf32>
    %cst_63 = arith.constant dense<0.000000e+00> : vector<48x64xf32>
    %109 = tpu.matmul %107, %108, %cst_63 {dimension_numbers = #tpu.dot_dimension_numbers<[1], [0], [0], [1], [0, 0, 1, 1], [], []>} : vector<48x64xf32>, vector<64x64xf32>, vector<48x64xf32> -> vector<48x64xf32>
    %110 = vector.broadcast %106 : vector<1x64xf32> to vector<48x64xf32>
    %111 = arith.addf %109, %110 : vector<48x64xf32>
    %cst_64 = arith.constant 0.000000e+00 : f32
    %112 = vector.broadcast %cst_64 : f32 to vector<48x64xf32>
    %113 = arith.cmpf ogt, %111, %112 : vector<48x64xf32>
    %cst_65 = arith.constant 2.000000e-01 : f32
    %114 = vector.broadcast %cst_65 : f32 to vector<48x64xf32>
    %115 = arith.mulf %114, %111 : vector<48x64xf32>
    %116 = arith.select %113, %111, %115 : vector<48x64xi1>, vector<48x64xf32>
    %117 = vector.extract_strided_slice %103 {offsets = [0, 64], sizes = [48, 128], strides = [1, 1]} : vector<48x192xf32> to vector<48x128xf32>
    %118 = tpu.concatenate %116, %117 in 1 : vector<48x64xf32>, vector<48x128xf32> -> vector<48x192xf32>
    %cst_66 = arith.constant dense<0.000000e+00> : vector<48x128xf32>
    %119 = tpu.matmul %118, %4, %cst_66 {dimension_numbers = #tpu.dot_dimension_numbers<[1], [0], [0], [1], [0, 0, 1, 1], [], []>} : vector<48x192xf32>, vector<192x128xf32>, vector<48x128xf32> -> vector<48x128xf32>
    %120 = vector.broadcast %3 : vector<1x128xf32> to vector<48x128xf32>
    %121 = arith.addf %119, %120 : vector<48x128xf32>
    %c16 = arith.constant 16 : index
    %c0_67 = arith.constant 0 : index
    %122 = vector.load %arg7[%c16, %c0_67] : memref<80x128xf32, #tpu.memory_space<vmem>>, vector<48x128xf32>
    tpu.vector_store %arg7[%c16, %c0_67], %121 {strides = array<i32>} : memref<80x128xf32, #tpu.memory_space<vmem>>, vector<48x128xf32>,
    %123 = vector.extract_strided_slice %121 {offsets = [16, 0], sizes = [8, 32], strides = [1, 1]} : vector<48x128xf32> to vector<8x32xf32>
    %124 = vector.extract_strided_slice %121 {offsets = [24, 0], sizes = [8, 32], strides = [1, 1]} : vector<48x128xf32> to vector<8x32xf32>
    %cst_68 = arith.constant 0.000000e+00 : f32
    %125 = vector.broadcast %cst_68 : f32 to vector<16x32xf32>
    %126 = tpu.concatenate %123, %124 in 0 : vector<8x32xf32>, vector<8x32xf32> -> vector<16x32xf32>
    %127 = tpu.concatenate %60, %61 in 0 : vector<8x32xf32>, vector<8x32xf32> -> vector<16x32xf32>
    %128 = tpu.concatenate %125, %125, %125, %125, %126, %127 in 1 : vector<16x32xf32>, vector<16x32xf32>, vector<16x32xf32>, vector<16x32xf32>, vector<16x32xf32>, vector<16x32xf32> -> vector<16x192xf32>
    %c0_69 = arith.constant 0 : index
    %c0_70 = arith.constant 0 : index
    %129 = vector.load %arg3[%c0_69, %c0_70] : memref<192x192xf32, #tpu.memory_space<vmem>>, vector<192x192xf32>
    %cst_71 = arith.constant dense<0.000000e+00> : vector<16x192xf32>
    %130 = tpu.matmul %128, %129, %cst_71 {dimension_numbers = #tpu.dot_dimension_numbers<[1], [0], [0], [1], [0, 0, 1, 1], [], []>} : vector<16x192xf32>, vector<192x192xf32>, vector<16x192xf32> -> vector<16x192xf32>
    %131 = vector.broadcast %2 : vector<1x192xf32> to vector<16x192xf32>
    %132 = arith.addf %130, %131 : vector<16x192xf32>
    %cst_72 = arith.constant 0.000000e+00 : f32
    %133 = vector.broadcast %cst_72 : f32 to vector<16x192xf32>
    %134 = arith.cmpf ogt, %132, %133 : vector<16x192xf32>
    %cst_73 = arith.constant 2.000000e-01 : f32
    %135 = vector.broadcast %cst_73 : f32 to vector<16x192xf32>
    %136 = arith.mulf %135, %132 : vector<16x192xf32>
    %137 = arith.select %134, %132, %136 : vector<16x192xi1>, vector<16x192xf32>
    %c0_74 = arith.constant 0 : index
    %c0_75 = arith.constant 0 : index
    %c0_76 = arith.constant 0 : index
    %138 = vector.load %arg4[%c0_74, %c0_75, %c0_76] : memref<3x192x192xf32, #tpu.memory_space<vmem>>, vector<1x192x192xf32>
    %139 = vector.shape_cast %138 : vector<1x192x192xf32> to vector<192x192xf32>
    %c1_77 = arith.constant 1 : index
    %c0_78 = arith.constant 0 : index
    %140 = vector.load %arg5[%c1_77, %c0_78] : memref<5x192xf32, #tpu.memory_space<vmem>>, vector<1x192xf32>
    %cst_79 = arith.constant dense<0.000000e+00> : vector<16x192xf32>
    %141 = tpu.matmul %137, %139, %cst_79 {dimension_numbers = #tpu.dot_dimension_numbers<[1], [0], [0], [1], [0, 0, 1, 1], [], []>} : vector<16x192xf32>, vector<192x192xf32>, vector<16x192xf32> -> vector<16x192xf32>
    %142 = vector.broadcast %140 : vector<1x192xf32> to vector<16x192xf32>
    %143 = arith.addf %141, %142 : vector<16x192xf32>
    %cst_80 = arith.constant 0.000000e+00 : f32
    %144 = vector.broadcast %cst_80 : f32 to vector<16x192xf32>
    %145 = arith.cmpf ogt, %143, %144 : vector<16x192xf32>
    %cst_81 = arith.constant 2.000000e-01 : f32
    %146 = vector.broadcast %cst_81 : f32 to vector<16x192xf32>
    %147 = arith.mulf %146, %143 : vector<16x192xf32>
    %148 = arith.select %145, %143, %147 : vector<16x192xi1>, vector<16x192xf32>
    %c1_82 = arith.constant 1 : index
    %c0_83 = arith.constant 0 : index
    %c0_84 = arith.constant 0 : index
    %149 = vector.load %arg4[%c1_82, %c0_83, %c0_84] : memref<3x192x192xf32, #tpu.memory_space<vmem>>, vector<1x192x192xf32>
    %150 = vector.shape_cast %149 : vector<1x192x192xf32> to vector<192x192xf32>
    %c2_85 = arith.constant 2 : index
    %c0_86 = arith.constant 0 : index
    %151 = vector.load %arg5[%c2_85, %c0_86] : memref<5x192xf32, #tpu.memory_space<vmem>>, vector<1x192xf32>
    %cst_87 = arith.constant dense<0.000000e+00> : vector<16x192xf32>
    %152 = tpu.matmul %148, %150, %cst_87 {dimension_numbers = #tpu.dot_dimension_numbers<[1], [0], [0], [1], [0, 0, 1, 1], [], []>} : vector<16x192xf32>, vector<192x192xf32>, vector<16x192xf32> -> vector<16x192xf32>
    %153 = vector.broadcast %151 : vector<1x192xf32> to vector<16x192xf32>
    %154 = arith.addf %152, %153 : vector<16x192xf32>
    %cst_88 = arith.constant 0.000000e+00 : f32
    %155 = vector.broadcast %cst_88 : f32 to vector<16x192xf32>
    %156 = arith.cmpf ogt, %154, %155 : vector<16x192xf32>
    %cst_89 = arith.constant 2.000000e-01 : f32
    %157 = vector.broadcast %cst_89 : f32 to vector<16x192xf32>
    %158 = arith.mulf %157, %154 : vector<16x192xf32>
    %159 = arith.select %156, %154, %158 : vector<16x192xi1>, vector<16x192xf32>
    %cst_90 = arith.constant dense<0.000000e+00> : vector<16x128xf32>
    %160 = tpu.matmul %159, %4, %cst_90 {dimension_numbers = #tpu.dot_dimension_numbers<[1], [0], [0], [1], [0, 0, 1, 1], [], []>} : vector<16x192xf32>, vector<192x128xf32>, vector<16x128xf32> -> vector<16x128xf32>
    %161 = vector.broadcast %3 : vector<1x128xf32> to vector<16x128xf32>
    %162 = arith.addf %160, %161 : vector<16x128xf32>
    %c64 = arith.constant 64 : index
    %c0_91 = arith.constant 0 : index
    %163 = vector.load %arg7[%c64, %c0_91] : memref<80x128xf32, #tpu.memory_space<vmem>>, vector<16x128xf32>
    tpu.vector_store %arg7[%c64, %c0_91], %162 {strides = array<i32>} : memref<80x128xf32, #tpu.memory_space<vmem>>, vector<16x128xf32>,
    return
  }
}

</mosaic_0001>

<llo_original>
// kernel: setops_forward.1
$region0: #{setops_forward.1}
  #allocation0 [shape = 'u32[]', space=smem, size = 0x4, offset = 0x4, fixed_abs, tag = 'smem constant byte address 0x4 - core index']
  #allocation1 [shape = 'u32[72,128]{1,0:T(1,128)}', space=vmem, size = 0x9000, scoped, tag = 'internal scratch']
  %s0 = inlined_call_operand.hbm [shape: f32[8,32], index: 0, kind: input, shape index: {}]
  %s1 = inlined_call_operand.hbm [shape: f32[8,32], index: 1, kind: input, shape index: {}]
  %s2 = inlined_call_operand.hbm [shape: f32[64,192], index: 2, kind: input, shape index: {}]
  %s3 = inlined_call_operand.hbm [shape: f32[192,192], index: 3, kind: input, shape index: {}]
  %s4 = inlined_call_operand.hbm [shape: f32[3,192,192], index: 4, kind: input, shape index: {}]
  %s5 = inlined_call_operand.hbm [shape: f32[5,192], index: 5, kind: input, shape index: {}]
  %s6 = inlined_call_operand.hbm [shape: f32[192,128], index: 6, kind: input, shape index: {}]
  %s7 = inlined_call_operand.vmem [shape: f32[80,128], index: 7, kind: output, shape index: {}]
  %s8 = sld [smem:[#allocation0]]
  $region66: #{setops_forward.1} parent=0
    _
  %s10 = ssub.s32 1, %s8
  %s11 = scalar_select 0, %s10, %s8
  $region1: #{setops_forward.1} parent=0
    #allocation2 [shape = 'u8[4096]{0}', space=vmem, size = 0x1000, scoped, tag = 'input window, operand 0, single buffered']
    #allocation3 [shape = 's32[1]{0}', space=sflag, size = 0x4, scoped, tag = 'scoped memory for setops_forward.1']
    #allocation4 [shape = 'u8[4096]{0}', space=vmem, size = 0x1000, scoped, tag = 'input window, operand 1, single buffered']
    #allocation5 [shape = 's32[1]{0}', space=sflag, size = 0x4, scoped, tag = 'scoped memory for setops_forward.1']
    #allocation6 [shape = 'u8[65536]{0}', space=vmem, size = 0x10000, scoped, tag = 'input window, operand 2, single buffered']
    #allocation7 [shape = 'u8[196608]{0}', space=vmem, size = 0x30000, scoped, tag = 'input window, operand 3, single buffered']
    #allocation8 [shape = 's32[1]{0}', space=sflag, size = 0x4, scoped, tag = 'scoped memory for setops_forward.1']
    #allocation9 [shape = 'u8[589824]{0}', space=vmem, size = 0x90000, scoped, tag = 'input window, operand 4, single buffered']
    #allocation10 [shape = 'u8[8192]{0}', space=vmem, size = 0x2000, scoped, tag = 'input window, operand 5, single buffered']
    #allocation11 [shape = 's32[1]{0}', space=sflag, size = 0x4, scoped, tag = 'scoped memory for setops_forward.1']
    #allocation12 [shape = 'u8[98304]{0}', space=vmem, size = 0x18000, scoped, tag = 'input window, operand 6, single buffered']
    %12 = vsyncpa [#allocation3], 0
    %13 = vsyncpa [#allocation5], 0
    %14 = vsyncpa [#allocation8], 0
    %15 = vsyncpa [#allocation11], 0
    // Predicated region
    $region2: #{setops_forward.1} parent=1 // pred_check
      _
    $region3: #{setops_forward.1} parent=1 // pred_check_branch
      %17 = sbr.rel (0) target = $region5
    $region4: #{setops_forward.1} parent=1 // pred_region
      %19 = vsyncadd [#allocation3], 0
      %s21 = sshll.u32 %s0, 4
      %s22 = int_to_ptr.hbm [resolvable:$true] %s21
      %s23 = sshll.u32 [#allocation2], 4
      %s24 = int_to_ptr.vmem [resolvable:$true] %s23
      %26 = dma.hbm_to_vmem [thread:$0]  %s22, 128, %s24, [#allocation3]
    $region5: #{setops_forward.1} parent=1 // pred_fallthru
      _
    // Predicated region
    $region6: #{setops_forward.1} parent=1 // pred_check
      _
    $region7: #{setops_forward.1} parent=1 // pred_check_branch
      %28 = sbr.rel (0) target = $region9
    $region8: #{setops_forward.1} parent=1 // pred_region
      %30 = vsyncadd [#allocation5], 0
      %s32 = sshll.u32 %s1, 4
      %s33 = int_to_ptr.hbm [resolvable:$true] %s32
      %s34 = sshll.u32 [#allocation4], 4
      %s35 = int_to_ptr.vmem [resolvable:$true] %s34
      %37 = dma.hbm_to_vmem [thread:$0]  %s33, 128, %s35, [#allocation5]
    $region9: #{setops_forward.1} parent=1 // pred_fallthru
      _
    // Predicated region
    $region10: #{setops_forward.1} parent=1 // pred_check
      _
    $region11: #{setops_forward.1} parent=1 // pred_check_branch
      %39 = sbr.rel (0) target = $region13
    $region12: #{setops_forward.1} parent=1 // pred_region
      %41 = vsyncadd [#allocation5], 0
      %s42 = sshll.u32 %s2, 4
      %s43 = int_to_ptr.hbm [resolvable:$true] %s42
      %s44 = sshll.u32 [#allocation6], 4
      %s45 = int_to_ptr.vmem [resolvable:$true] %s44
      %50 = dma.hbm_to_vmem [thread:$0]  %s43, 2048, %s45, [#allocation5], 256, 256, 16
    $region13: #{setops_forward.1} parent=1 // pred_fallthru
      _
    // Predicated region
    $region14: #{setops_forward.1} parent=1 // pred_check
      _
    $region15: #{setops_forward.1} parent=1 // pred_check_branch
      %52 = sbr.rel (0) target = $region17
    $region16: #{setops_forward.1} parent=1 // pred_region
      %54 = vsyncadd [#allocation8], 0
      %s55 = sshll.u32 %s3, 4
      %s56 = int_to_ptr.hbm [resolvable:$true] %s55
      %s57 = sshll.u32 [#allocation7], 4
      %s58 = int_to_ptr.vmem [resolvable:$true] %s57
      %63 = dma.hbm_to_vmem [thread:$0]  %s56, 6144, %s58, [#allocation8], 256, 256, 16
    $region17: #{setops_forward.1} parent=1 // pred_fallthru
      _
    // Predicated region
    $region18: #{setops_forward.1} parent=1 // pred_check
      _
    $region19: #{setops_forward.1} parent=1 // pred_check_branch
      %65 = sbr.rel (0) target = $region21
    $region20: #{setops_forward.1} parent=1 // pred_region
      %67 = vsyncadd [#allocation8], 0
      %s68 = sshll.u32 %s4, 4
      %s69 = int_to_ptr.hbm [resolvable:$true] %s68
      %s70 = sshll.u32 [#allocation9], 4
      %s71 = int_to_ptr.vmem [resolvable:$true] %s70
      %76 = dma.hbm_to_vmem [thread:$0]  %s69, 18432, %s71, [#allocation8], 256, 256, 16
    $region21: #{setops_forward.1} parent=1 // pred_fallthru
      _
    // Predicated region
    $region22: #{setops_forward.1} parent=1 // pred_check
      _
    $region23: #{setops_forward.1} parent=1 // pred_check_branch
      %78 = sbr.rel (0) target = $region25
    $region24: #{setops_forward.1} parent=1 // pred_region
      %80 = vsyncadd [#allocation11], 0
      %s82 = sshll.u32 %s5, 4
      %s83 = int_to_ptr.hbm [resolvable:$true] %s82
      %s84 = sshll.u32 [#allocation10], 4
      %s85 = int_to_ptr.vmem [resolvable:$true] %s84
      %87 = dma.hbm_to_vmem [thread:$0]  %s83, 256, %s85, [#allocation11]
    $region25: #{setops_forward.1} parent=1 // pred_fallthru
      _
    // Predicated region
    $region26: #{setops_forward.1} parent=1 // pred_check
      _
    $region27: #{setops_forward.1} parent=1 // pred_check_branch
      %89 = sbr.rel (0) target = $region29
    $region28: #{setops_forward.1} parent=1 // pred_region
      %91 = vsyncadd [#allocation11], 0
      %s92 = sshll.u32 %s6, 4
      %s93 = int_to_ptr.hbm [resolvable:$true] %s92
      %s94 = sshll.u32 [#allocation12], 4
      %s95 = int_to_ptr.vmem [resolvable:$true] %s94
      %100 = dma.hbm_to_vmem [thread:$0]  %s93, 3072, %s95, [#allocation11], 128, 128, 8
    $region29: #{setops_forward.1} parent=1 // pred_fallthru
      _
    // Predicated region
    $region30: #{setops_forward.1} parent=1 // pred_check
      _
    $region31: #{setops_forward.1} parent=1 // pred_check_branch
      %102 = sbr.rel (0) target = $region33
    $region32: #{setops_forward.1} parent=1 // pred_region
      %104 = dma.done [#allocation3], 128
    $region33: #{setops_forward.1} parent=1 // pred_fallthru
      _
    // Predicated region
    $region34: #{setops_forward.1} parent=1 // pred_check
      _
    $region35: #{setops_forward.1} parent=1 // pred_check_branch
      %106 = sbr.rel (0) target = $region37
    $region36: #{setops_forward.1} parent=1 // pred_region
      %108 = dma.done [#allocation5], 128
    $region37: #{setops_forward.1} parent=1 // pred_fallthru
      _
    // Predicated region
    $region38: #{setops_forward.1} parent=1 // pred_check
      _
    $region39: #{setops_forward.1} parent=1 // pred_check_branch
      %110 = sbr.rel (0) target = $region41
    $region40: #{setops_forward.1} parent=1 // pred_region
      %112 = dma.done [#allocation5], 2048
    $region41: #{setops_forward.1} parent=1 // pred_fallthru
      _
    // Predicated region
    $region42: #{setops_forward.1} parent=1 // pred_check
      _
    $region43: #{setops_forward.1} parent=1 // pred_check_branch
      %114 = sbr.rel (0) target = $region45
    $region44: #{setops_forward.1} parent=1 // pred_region
      %116 = dma.done [#allocation8], 6144
    $region45: #{setops_forward.1} parent=1 // pred_fallthru
      _
    // Predicated region
    $region46: #{setops_forward.1} parent=1 // pred_check
      _
    $region47: #{setops_forward.1} parent=1 // pred_check_branch
      %118 = sbr.rel (0) target = $region49
    $region48: #{setops_forward.1} parent=1 // pred_region
      %120 = dma.done [#allocation8], 18432
    $region49: #{setops_forward.1} parent=1 // pred_fallthru
      _
    // Predicated region
    $region50: #{setops_forward.1} parent=1 // pred_check
      _
    $region51: #{setops_forward.1} parent=1 // pred_check_branch
      %122 = sbr.rel (0) target = $region53
    $region52: #{setops_forward.1} parent=1 // pred_region
      %124 = dma.done [#allocation11], 256
    $region53: #{setops_forward.1} parent=1 // pred_fallthru
      _
    // Predicated region
    $region54: #{setops_forward.1} parent=1 // pred_check
      _
    $region55: #{setops_forward.1} parent=1 // pred_check_branch
      %126 = sbr.rel (0) target = $region57
    $region56: #{setops_forward.1} parent=1 // pred_region
      %128 = dma.done [#allocation11], 3072
    $region57: #{setops_forward.1} parent=1 // pred_fallthru
      _
    %v129 = vld [vmem:[#allocation2] sm:$0xff]
    %v130 = vld [vmem:[#allocation4] sm:$0xff]
    %v131 = vld [vmem:[#allocation10] ss:$8 sm:$0x3]
    %v132 = vld [vmem:[#allocation10 + $0x4] ss:$0 sm:$0xff]
    %v133 = vld [vmem:[#allocation12] sm:$0xff]
    %v134 = vld [vmem:[#allocation12 + $0x8] sm:$0xff]
    %v135 = vld [vmem:[#allocation12 + $0x10] sm:$0xff]
    %v136 = vld [vmem:[#allocation12 + $0x18] sm:$0xff]
    %v137 = vld [vmem:[#allocation12 + $0x20] sm:$0xff]
    %v138 = vld [vmem:[#allocation12 + $0x28] sm:$0xff]
    %v139 = vld [vmem:[#allocation12 + $0x30] sm:$0xff]
    %v140 = vld [vmem:[#allocation12 + $0x38] sm:$0xff]
    %v141 = vld [vmem:[#allocation12 + $0x40] sm:$0xff]
    %v142 = vld [vmem:[#allocation12 + $0x48] sm:$0xff]
    %v143 = vld [vmem:[#allocation12 + $0x50] sm:$0xff]
    %v144 = vld [vmem:[#allocation12 + $0x58] sm:$0xff]
    %v145 = vld [vmem:[#allocation12 + $0x60] sm:$0xff]
    %v146 = vld [vmem:[#allocation12 + $0x68] sm:$0xff]
    %v147 = vld [vmem:[#allocation12 + $0x70] sm:$0xff]
    %v148 = vld [vmem:[#allocation12 + $0x78] sm:$0xff]
    %v149 = vld [vmem:[#allocation12 + $0x80] sm:$0xff]
    %v150 = vld [vmem:[#allocation12 + $0x88] sm:$0xff]
    %v151 = vld [vmem:[#allocation12 + $0x90] sm:$0xff]
    %v152 = vld [vmem:[#allocation12 + $0x98] sm:$0xff]
    %v153 = vld [vmem:[#allocation12 + $0xa0] sm:$0xff]
    %v154 = vld [vmem:[#allocation12 + $0xa8] sm:$0xff]
    %v155 = vld [vmem:[#allocation12 + $0xb0] sm:$0xff]
    %v156 = vld [vmem:[#allocation12 + $0xb8] sm:$0xff]
    %158 = vrot.lane.b32.xlu0 %v130, 32
    %v159 = vpop.permute.xlu0 %158
    %vm161 = vcmask 261120
    %v162 = vsel %vm161, %v129, %v159
    %164 = vrot.lane.b32.xlu0 %v129, 32
    %v165 = vpop.permute.xlu0 %164
    %v167 = vsel %vm161, %v130, %v165
    %v168 = vld [vmem:[#allocation6] sm:$0xff]
    %v169 = vld [vmem:[#allocation6 + $0x8] sm:$0xff]
    %v170 = vld [vmem:[#allocation6 + $0x10] sm:$0xff]
    %v171 = vld [vmem:[#allocation6 + $0x18] sm:$0xff]
    %v172 = vld [vmem:[#allocation6 + $0x20] sm:$0xff]
    %v173 = vld [vmem:[#allocation6 + $0x28] sm:$0xff]
    %v174 = vld [vmem:[#allocation6 + $0x30] sm:$0xff]
    %v175 = vld [vmem:[#allocation6 + $0x38] sm:$0xff]
    %v176 = vld [vmem:[#allocation6 + $0x40] sm:$0xff]
    %v177 = vld [vmem:[#allocation6 + $0x48] sm:$0xff]
    %v178 = vld [vmem:[#allocation6 + $0x50] sm:$0xff]
    %v179 = vld [vmem:[#allocation6 + $0x58] sm:$0xff]
    %v180 = vld [vmem:[#allocation6 + $0x60] sm:$0xff]
    %v181 = vld [vmem:[#allocation6 + $0x68] sm:$0xff]
    %v182 = vld [vmem:[#allocation6 + $0x70] sm:$0xff]
    %v183 = vld [vmem:[#allocation6 + $0x78] sm:$0xff]
    %v185 = vperm.slane %v131, 0
    %v186 = vperm.slane %v131, 1
    %vm189 = vcmask 523264
    %v191 = vsel %vm189, %v162, 0
    %v194 = vsel %vm189, %v167, 0
    %196 = vmatpush.msra.mxu0 0.0
    %197 = vmatpush.msra.mxu0 0.0
    %198 = vmatpush.msra.mxu0 0.0
    %199 = vmatpush.msra.mxu0 0.0
    %200 = vmatpush.msra.mxu0 0.0
    %201 = vmatpush.msra.mxu0 0.0
    %202 = vmatpush.msra.mxu0 0.0
    %203 = vmatpush.msra.mxu0 0.0
    %204 = vmatpush.msra.mxu0 %v182
    %205 = vmatpush.msra.mxu0 %v180
    %206 = vmatpush.msra.mxu0 %v178
    %207 = vmatpush.msra.mxu0 %v176
    %208 = vmatpush.msra.mxu0 %v174
    %209 = vmatpush.msra.mxu0 %v172
    %210 = vmatpush.msra.mxu0 %v170
    %211 = vmatpush.msra.mxu0 %v168
    %212 = vmatmul.f32.gmra.mxu0 %v191
    %v213 = vpop.f32.mrf.mxu0
    %v214 = vadd.f32 %v185, %v213
    %215 = vmatmul.f32.gmra.mxu0 %v194
    %v216 = vpop.f32.mrf.mxu0
    %v217 = vadd.f32 %v185, %v216
    %218 = vdwg.mxu0
    %219 = vmatpush.msra.mxu0 0.0
    %220 = vmatpush.msra.mxu0 0.0
    %221 = vmatpush.msra.mxu0 0.0
    %222 = vmatpush.msra.mxu0 0.0
    %223 = vmatpush.msra.mxu0 0.0
    %224 = vmatpush.msra.mxu0 0.0
    %225 = vmatpush.msra.mxu0 0.0
    %226 = vmatpush.msra.mxu0 0.0
    %227 = vmatpush.msra.mxu0 %v183
    %228 = vmatpush.msra.mxu0 %v181
    %229 = vmatpush.msra.mxu0 %v179
    %230 = vmatpush.msra.mxu0 %v177
    %231 = vmatpush.msra.mxu0 %v175
    %232 = vmatpush.msra.mxu0 %v173
    %233 = vmatpush.msra.mxu0 %v171
    %234 = vmatpush.msra.mxu0 %v169
    %235 = vmatmul.f32.gmra.mxu0 %v191
    %v236 = vpop.f32.mrf.mxu0
    %v237 = vadd.f32 %v186, %v236
    %238 = vmatmul.f32.gmra.mxu0 %v194
    %v239 = vpop.f32.mrf.mxu0
    %v240 = vadd.f32 %v186, %v239
    %241 = vdwg.mxu0
    %vm242 = vcmp.gt.f32.partialorder %v214, 0.0
    %vm243 = vcmp.gt.f32.partialorder %v237, 0.0
    %vm244 = vcmp.gt.f32.partialorder %v217, 0.0
    %vm245 = vcmp.gt.f32.partialorder %v240, 0.0
    %v246 = vmul.f32 %v214, 0.2
    %v247 = vmul.f32 %v237, 0.2
    %v248 = vmul.f32 %v217, 0.2
    %v249 = vmul.f32 %v240, 0.2
    %v250 = vsel %vm242, %v214, %v246
    %v251 = vsel %vm243, %v237, %v247
    %v252 = vsel %vm244, %v217, %v248
    %v253 = vsel %vm245, %v240, %v249
    %v254 = vld [vmem:[#allocation9] sm:$0xff]
    %v255 = vld [vmem:[#allocation9 + $0x8] sm:$0xff]
    %v256 = vld [vmem:[#allocation9 + $0x10] sm:$0xff]
    %v257 = vld [vmem:[#allocation9 + $0x18] sm:$0xff]
    %v258 = vld [vmem:[#allocation9 + $0x20] sm:$0xff]
    %v259 = vld [vmem:[#allocation9 + $0x28] sm:$0xff]
    %v260 = vld [vmem:[#allocation9 + $0x30] sm:$0xff]
    %v261 = vld [vmem:[#allocation9 + $0x38] sm:$0xff]
    %v262 = vld [vmem:[#allocation9 + $0x40] sm:$0xff]
    %v263 = vld [vmem:[#allocation9 + $0x48] sm:$0xff]
    %v264 = vld [vmem:[#allocation9 + $0x50] sm:$0xff]
    %v265 = vld [vmem:[#allocation9 + $0x58] sm:$0xff]
    %v266 = vld [vmem:[#allocation9 + $0x60] sm:$0xff]
    %v267 = vld [vmem:[#allocation9 + $0x68] sm:$0xff]
    %v268 = vld [vmem:[#allocation9 + $0x70] sm:$0xff]
    %v269 = vld [vmem:[#allocation9 + $0x78] sm:$0xff]
    %v270 = vld [vmem:[#allocation9 + $0x80] sm:$0xff]
    %v271 = vld [vmem:[#allocation9 + $0x88] sm:$0xff]
    %v272 = vld [vmem:[#allocation9 + $0x90] sm:$0xff]
    %v273 = vld [vmem:[#allocation9 + $0x98] sm:$0xff]
    %v274 = vld [vmem:[#allocation9 + $0xa0] sm:$0xff]
    %v275 = vld [vmem:[#allocation9 + $0xa8] sm:$0xff]
    %v276 = vld [vmem:[#allocation9 + $0xb0] sm:$0xff]
    %v277 = vld [vmem:[#allocation9 + $0xb8] sm:$0xff]
    %v278 = vld [vmem:[#allocation9 + $0xc0] sm:$0xff]
    %v279 = vld [vmem:[#allocation9 + $0xc8] sm:$0xff]
    %v280 = vld [vmem:[#allocation9 + $0xd0] sm:$0xff]
    %v281 = vld [vmem:[#allocation9 + $0xd8] sm:$0xff]
    %v282 = vld [vmem:[#allocation9 + $0xe0] sm:$0xff]
    %v283 = vld [vmem:[#allocation9 + $0xe8] sm:$0xff]
    %v284 = vld [vmem:[#allocation9 + $0xf0] sm:$0xff]
    %v285 = vld [vmem:[#allocation9 + $0xf8] sm:$0xff]
    %v286 = vld [vmem:[#allocation9 + $0x100] sm:$0xff]
    %v287 = vld [vmem:[#allocation9 + $0x108] sm:$0xff]
    %v288 = vld [vmem:[#allocation9 + $0x110] sm:$0xff]
    %v289 = vld [vmem:[#allocation9 + $0x118] sm:$0xff]
    %v290 = vld [vmem:[#allocation9 + $0x120] sm:$0xff]
    %v291 = vld [vmem:[#allocation9 + $0x128] sm:$0xff]
    %v292 = vld [vmem:[#allocation9 + $0x130] sm:$0xff]
    %v293 = vld [vmem:[#allocation9 + $0x138] sm:$0xff]
    %v294 = vld [vmem:[#allocation9 + $0x140] sm:$0xff]
    %v295 = vld [vmem:[#allocation9 + $0x148] sm:$0xff]
    %v296 = vld [vmem:[#allocation9 + $0x150] sm:$0xff]
    %v297 = vld [vmem:[#allocation9 + $0x158] sm:$0xff]
    %v298 = vld [vmem:[#allocation9 + $0x160] sm:$0xff]
    %v299 = vld [vmem:[#allocation9 + $0x168] sm:$0xff]
    %v300 = vld [vmem:[#allocation9 + $0x170] sm:$0xff]
    %v301 = vld [vmem:[#allocation9 + $0x178] sm:$0xff]
    %s302 = scalar_lea.vmem [#allocation10], 1
    %v303 = vld [vmem:[%s302] ss:$8 sm:$0x3]
    %v305 = vperm.slane %v303, 0
    %v306 = vperm.slane %v303, 1
    %v310 = vsel %vm189, %v251, 0
    %v313 = vsel %vm189, %v253, 0
    %315 = vmatpush.msra.mxu0 %v284
    %316 = vmatpush.msra.mxu0 %v282
    %317 = vmatpush.msra.mxu0 %v280
    %318 = vmatpush.msra.mxu0 %v278
    %319 = vmatpush.msra.mxu0 %v276
    %320 = vmatpush.msra.mxu0 %v274
    %321 = vmatpush.msra.mxu0 %v272
    %322 = vmatpush.msra.mxu0 %v270
    %323 = vmatpush.msra.mxu0 %v268
    %324 = vmatpush.msra.mxu0 %v266
    %325 = vmatpush.msra.mxu0 %v264
    %326 = vmatpush.msra.mxu0 %v262
    %327 = vmatpush.msra.mxu0 %v260
    %328 = vmatpush.msra.mxu0 %v258
    %329 = vmatpush.msra.mxu0 %v256
    %330 = vmatpush.msra.mxu0 %v254
    %331 = vmatmul.f32.gmra.mxu0 %v250
    %v332 = vpop.f32.mrf.mxu0
    %v333 = vadd.f32 %v305, %v332
    %334 = vmatmul.f32.gmra.mxu0 %v252
    %v335 = vpop.f32.mrf.mxu0
    %v336 = vadd.f32 %v305, %v335
    %337 = vdwg.mxu0
    %338 = vmatpush.msra.mxu0 0.0
    %339 = vmatpush.msra.mxu0 0.0
    %340 = vmatpush.msra.mxu0 0.0
    %341 = vmatpush.msra.mxu0 0.0
    %342 = vmatpush.msra.mxu0 0.0
    %343 = vmatpush.msra.mxu0 0.0
    %344 = vmatpush.msra.mxu0 0.0
    %345 = vmatpush.msra.mxu0 0.0
    %346 = vmatpush.msra.mxu0 %v300
    %347 = vmatpush.msra.mxu0 %v298
    %348 = vmatpush.msra.mxu0 %v296
    %349 = vmatpush.msra.mxu0 %v294
    %350 = vmatpush.msra.mxu0 %v292
    %351 = vmatpush.msra.mxu0 %v290
    %352 = vmatpush.msra.mxu0 %v288
    %353 = vmatpush.msra.mxu0 %v286
    %354 = vmatmul.f32.gmra.mxu0 %v310
    %v355 = vpop.f32.mrf.mxu0
    %v356 = vadd.f32 %v333, %v355
    %357 = vmatmul.f32.gmra.mxu0 %v313
    %v358 = vpop.f32.mrf.mxu0
    %v359 = vadd.f32 %v336, %v358
    %360 = vdwg.mxu0
    %361 = vmatpush.msra.mxu0 %v285
    %362 = vmatpush.msra.mxu0 %v283
    %363 = vmatpush.msra.mxu0 %v281
    %364 = vmatpush.msra.mxu0 %v279
    %365 = vmatpush.msra.mxu0 %v277
    %366 = vmatpush.msra.mxu0 %v275
    %367 = vmatpush.msra.mxu0 %v273
    %368 = vmatpush.msra.mxu0 %v271
    %369 = vmatpush.msra.mxu0 %v269
    %370 = vmatpush.msra.mxu0 %v267
    %371 = vmatpush.msra.mxu0 %v265
    %372 = vmatpush.msra.mxu0 %v263
    %373 = vmatpush.msra.mxu0 %v261
    %374 = vmatpush.msra.mxu0 %v259
    %375 = vmatpush.msra.mxu0 %v257
    %376 = vmatpush.msra.mxu0 %v255
    %377 = vmatmul.f32.gmra.mxu0 %v250
    %v378 = vpop.f32.mrf.mxu0
    %v379 = vadd.f32 %v306, %v378
    %380 = vmatmul.f32.gmra.mxu0 %v252
    %v381 = vpop.f32.mrf.mxu0
    %v382 = vadd.f32 %v306, %v381
    %383 = vdwg.mxu0
    %384 = vmatpush.msra.mxu0 0.0
    %385 = vmatpush.msra.mxu0 0.0
    %386 = vmatpush.msra.mxu0 0.0
    %387 = vmatpush.msra.mxu0 0.0
    %388 = vmatpush.msra.mxu0 0.0
    %389 = vmatpush.msra.mxu0 0.0
    %390 = vmatpush.msra.mxu0 0.0
    %391 = vmatpush.msra.mxu0 0.0
    %392 = vmatpush.msra.mxu0 %v301
    %393 = vmatpush.msra.mxu0 %v299
    %394 = vmatpush.msra.mxu0 %v297
    %395 = vmatpush.msra.mxu0 %v295
    %396 = vmatpush.msra.mxu0 %v293
    %397 = vmatpush.msra.mxu0 %v291
    %398 = vmatpush.msra.mxu0 %v289
    %399 = vmatpush.msra.mxu0 %v287
    %400 = vmatmul.f32.gmra.mxu0 %v310
    %v401 = vpop.f32.mrf.mxu0
    %v402 = vadd.f32 %v379, %v401
    %403 = vmatmul.f32.gmra.mxu0 %v313
    %v404 = vpop.f32.mrf.mxu0
    %v405 = vadd.f32 %v382, %v404
    %406 = vdwg.mxu0
    %vm407 = vcmp.gt.f32.partialorder %v356, 0.0
    %vm408 = vcmp.gt.f32.partialorder %v402, 0.0
    %vm409 = vcmp.gt.f32.partialorder %v359, 0.0
    %vm410 = vcmp.gt.f32.partialorder %v405, 0.0
    %v411 = vmul.f32 %v356, 0.2
    %v412 = vmul.f32 %v402, 0.2
    %v413 = vmul.f32 %v359, 0.2
    %v414 = vmul.f32 %v405, 0.2
    %v415 = vsel %vm407, %v356, %v411
    %v416 = vsel %vm408, %v402, %v412
    %v417 = vsel %vm409, %v359, %v413
    %v418 = vsel %vm410, %v405, %v414
    %s419 = scalar_lea.vmem [#allocation9], 384
    %v420 = vld [vmem:[%s419] sm:$0xff]
    %v421 = vld [vmem:[%s419 + $0x8] sm:$0xff]
    %v422 = vld [vmem:[%s419 + $0x10] sm:$0xff]
    %v423 = vld [vmem:[%s419 + $0x18] sm:$0xff]
    %v424 = vld [vmem:[%s419 + $0x20] sm:$0xff]
    %v425 = vld [vmem:[%s419 + $0x28] sm:$0xff]
    %v426 = vld [vmem:[%s419 + $0x30] sm:$0xff]
    %v427 = vld [vmem:[%s419 + $0x38] sm:$0xff]
    %v428 = vld [vmem:[%s419 + $0x40] sm:$0xff]
    %v429 = vld [vmem:[%s419 + $0x48] sm:$0xff]
    %v430 = vld [vmem:[%s419 + $0x50] sm:$0xff]
    %v431 = vld [vmem:[%s419 + $0x58] sm:$0xff]
    %v432 = vld [vmem:[%s419 + $0x60] sm:$0xff]
    %v433 = vld [vmem:[%s419 + $0x68] sm:$0xff]
    %v434 = vld [vmem:[%s419 + $0x70] sm:$0xff]
    %v435 = vld [vmem:[%s419 + $0x78] sm:$0xff]
    %v436 = vld [vmem:[%s419 + $0x80] sm:$0xff]
    %v437 = vld [vmem:[%s419 + $0x88] sm:$0xff]
    %v438 = vld [vmem:[%s419 + $0x90] sm:$0xff]
    %v439 = vld [vmem:[%s419 + $0x98] sm:$0xff]
    %v440 = vld [vmem:[%s419 + $0xa0] sm:$0xff]
    %v441 = vld [vmem:[%s419 + $0xa8] sm:$0xff]
    %v442 = vld [vmem:[%s419 + $0xb0] sm:$0xff]
    %v443 = vld [vmem:[%s419 + $0xb8] sm:$0xff]
    %v444 = vld [vmem:[%s419 + $0xc0] sm:$0xff]
    %v445 = vld [vmem:[%s419 + $0xc8] sm:$0xff]
    %v446 = vld [vmem:[%s419 + $0xd0] sm:$0xff]
    %v447 = vld [vmem:[%s419 + $0xd8] sm:$0xff]
    %v448 = vld [vmem:[%s419 + $0xe0] sm:$0xff]
    %v449 = vld [vmem:[%s419 + $0xe8] sm:$0xff]
    %v450 = vld [vmem:[%s419 + $0xf0] sm:$0xff]
    %v451 = vld [vmem:[%s419 + $0xf8] sm:$0xff]
    %v452 = vld [vmem:[%s419 + $0x100] sm:$0xff]
    %v453 = vld [vmem:[%s419 + $0x108] sm:$0xff]
    %v454 = vld [vmem:[%s419 + $0x110] sm:$0xff]
    %v455 = vld [vmem:[%s419 + $0x118] sm:$0xff]
    %v456 = vld [vmem:[%s419 + $0x120] sm:$0xff]
    %v457 = vld [vmem:[%s419 + $0x128] sm:$0xff]
    %v458 = vld [vmem:[%s419 + $0x130] sm:$0xff]
    %v459 = vld [vmem:[%s419 + $0x138] sm:$0xff]
    %v460 = vld [vmem:[%s419 + $0x140] sm:$0xff]
    %v461 = vld [vmem:[%s419 + $0x148] sm:$0xff]
    %v462 = vld [vmem:[%s419 + $0x150] sm:$0xff]
    %v463 = vld [vmem:[%s419 + $0x158] sm:$0xff]
    %v464 = vld [vmem:[%s419 + $0x160] sm:$0xff]
    %v465 = vld [vmem:[%s419 + $0x168] sm:$0xff]
    %v466 = vld [vmem:[%s419 + $0x170] sm:$0xff]
    %v467 = vld [vmem:[%s419 + $0x178] sm:$0xff]
    %s468 = scalar_lea.vmem [#allocation10], 2
    %v469 = vld [vmem:[%s468] ss:$8 sm:$0x3]
    %v471 = vperm.slane %v469, 0
    %v472 = vperm.slane %v469, 1
    %v476 = vsel %vm189, %v416, 0
    %v479 = vsel %vm189, %v418, 0
    %481 = vmatpush.msra.mxu0 %v450
    %482 = vmatpush.msra.mxu0 %v448
    %483 = vmatpush.msra.mxu0 %v446
    %484 = vmatpush.msra.mxu0 %v444
    %485 = vmatpush.msra.mxu0 %v442
    %486 = vmatpush.msra.mxu0 %v440
    %487 = vmatpush.msra.mxu0 %v438
    %488 = vmatpush.msra.mxu0 %v436
    %489 = vmatpush.msra.mxu0 %v434
    %490 = vmatpush.msra.mxu0 %v432
    %491 = vmatpush.msra.mxu0 %v430
    %492 = vmatpush.msra.mxu0 %v428
    %493 = vmatpush.msra.mxu0 %v426
    %494 = vmatpush.msra.mxu0 %v424
    %495 = vmatpush.msra.mxu0 %v422
    %496 = vmatpush.msra.mxu0 %v420
    %497 = vmatmul.f32.gmra.mxu0 %v415
    %v498 = vpop.f32.mrf.mxu0
    %v499 = vadd.f32 %v471, %v498
    %500 = vmatmul.f32.gmra.mxu0 %v417
    %v501 = vpop.f32.mrf.mxu0
    %v502 = vadd.f32 %v471, %v501
    %503 = vdwg.mxu0
    %504 = vmatpush.msra.mxu0 0.0
    %505 = vmatpush.msra.mxu0 0.0
    %506 = vmatpush.msra.mxu0 0.0
    %507 = vmatpush.msra.mxu0 0.0
    %508 = vmatpush.msra.mxu0 0.0
    %509 = vmatpush.msra.mxu0 0.0
    %510 = vmatpush.msra.mxu0 0.0
    %511 = vmatpush.msra.mxu0 0.0
    %512 = vmatpush.msra.mxu0 %v466
    %513 = vmatpush.msra.mxu0 %v464
    %514 = vmatpush.msra.mxu0 %v462
    %515 = vmatpush.msra.mxu0 %v460
    %516 = vmatpush.msra.mxu0 %v458
    %517 = vmatpush.msra.mxu0 %v456
    %518 = vmatpush.msra.mxu0 %v454
    %519 = vmatpush.msra.mxu0 %v452
    %520 = vmatmul.f32.gmra.mxu0 %v476
    %v521 = vpop.f32.mrf.mxu0
    %v522 = vadd.f32 %v499, %v521
    %523 = vmatmul.f32.gmra.mxu0 %v479
    %v524 = vpop.f32.mrf.mxu0
    %v525 = vadd.f32 %v502, %v524
    %526 = vdwg.mxu0
    %527 = vmatpush.msra.mxu0 %v451
    %528 = vmatpush.msra.mxu0 %v449
    %529 = vmatpush.msra.mxu0 %v447
    %530 = vmatpush.msra.mxu0 %v445
    %531 = vmatpush.msra.mxu0 %v443
    %532 = vmatpush.msra.mxu0 %v441
    %533 = vmatpush.msra.mxu0 %v439
    %534 = vmatpush.msra.mxu0 %v437
    %535 = vmatpush.msra.mxu0 %v435
    %536 = vmatpush.msra.mxu0 %v433
    %537 = vmatpush.msra.mxu0 %v431
    %538 = vmatpush.msra.mxu0 %v429
    %539 = vmatpush.msra.mxu0 %v427
    %540 = vmatpush.msra.mxu0 %v425
    %541 = vmatpush.msra.mxu0 %v423
    %542 = vmatpush.msra.mxu0 %v421
    %543 = vmatmul.f32.gmra.mxu0 %v415
    %v544 = vpop.f32.mrf.mxu0
    %v545 = vadd.f32 %v472, %v544
    %546 = vmatmul.f32.gmra.mxu0 %v417
    %v547 = vpop.f32.mrf.mxu0
    %v548 = vadd.f32 %v472, %v547
    %549 = vdwg.mxu0
    %550 = vmatpush.msra.mxu0 0.0
    %551 = vmatpush.msra.mxu0 0.0
    %552 = vmatpush.msra.mxu0 0.0
    %553 = vmatpush.msra.mxu0 0.0
    %554 = vmatpush.msra.mxu0 0.0
    %555 = vmatpush.msra.mxu0 0.0
    %556 = vmatpush.msra.mxu0 0.0
    %557 = vmatpush.msra.mxu0 0.0
    %558 = vmatpush.msra.mxu0 %v467
    %559 = vmatpush.msra.mxu0 %v465
    %560 = vmatpush.msra.mxu0 %v463
    %561 = vmatpush.msra.mxu0 %v461
    %562 = vmatpush.msra.mxu0 %v459
    %563 = vmatpush.msra.mxu0 %v457
    %564 = vmatpush.msra.mxu0 %v455
    %565 = vmatpush.msra.mxu0 %v453
    %566 = vmatmul.f32.gmra.mxu0 %v476
    %v567 = vpop.f32.mrf.mxu0
    %v568 = vadd.f32 %v545, %v567
    %569 = vmatmul.f32.gmra.mxu0 %v479
    %v570 = vpop.f32.mrf.mxu0
    %v571 = vadd.f32 %v548, %v570
    %572 = vdwg.mxu0
    %vm573 = vcmp.gt.f32.partialorder %v522, 0.0
    %vm574 = vcmp.gt.f32.partialorder %v568, 0.0
    %vm575 = vcmp.gt.f32.partialorder %v525, 0.0
    %vm576 = vcmp.gt.f32.partialorder %v571, 0.0
    %v577 = vmul.f32 %v522, 0.2
    %v578 = vmul.f32 %v568, 0.2
    %v579 = vmul.f32 %v525, 0.2
    %v580 = vmul.f32 %v571, 0.2
    %v581 = vsel %vm573, %v522, %v577
    %v582 = vsel %vm574, %v568, %v578
    %v583 = vsel %vm575, %v525, %v579
    %v584 = vsel %vm576, %v571, %v580
    %s585 = scalar_lea.vmem [#allocation9], 768
    %v586 = vld [vmem:[%s585] sm:$0xff]
    %v587 = vld [vmem:[%s585 + $0x10] sm:$0xff]
    %v588 = vld [vmem:[%s585 + $0x20] sm:$0xff]
    %v589 = vld [vmem:[%s585 + $0x30] sm:$0xff]
    %v590 = vld [vmem:[%s585 + $0x40] sm:$0xff]
    %v591 = vld [vmem:[%s585 + $0x50] sm:$0xff]
    %v592 = vld [vmem:[%s585 + $0x60] sm:$0xff]
    %v593 = vld [vmem:[%s585 + $0x70] sm:$0xff]
    %v594 = vld [vmem:[#allocation10 + $0x3] ss:$0 sm:$0xff]
    %v596 = vsel %vm189, %v581, 0
    %v599 = vsel %vm189, %v583, 0
    %601 = vmatpush.msra.mxu0 0.0
    %602 = vmatpush.msra.mxu0 0.0
    %603 = vmatpush.msra.mxu0 0.0
    %604 = vmatpush.msra.mxu0 0.0
    %605 = vmatpush.msra.mxu0 0.0
    %606 = vmatpush.msra.mxu0 0.0
    %607 = vmatpush.msra.mxu0 0.0
    %608 = vmatpush.msra.mxu0 0.0
    %609 = vmatpush.msra.mxu0 %v593
    %610 = vmatpush.msra.mxu0 %v592
    %611 = vmatpush.msra.mxu0 %v591
    %612 = vmatpush.msra.mxu0 %v590
    %613 = vmatpush.msra.mxu0 %v589
    %614 = vmatpush.msra.mxu0 %v588
    %615 = vmatpush.msra.mxu0 %v587
    %616 = vmatpush.msra.mxu0 %v586
    %617 = vmatmul.f32.gmra.mxu0 %v596
    %v618 = vpop.f32.mrf.mxu0
    %v619 = vadd.f32 %v594, %v618
    %620 = vmatmul.f32.gmra.mxu0 %v599
    %v621 = vpop.f32.mrf.mxu0
    %v622 = vadd.f32 %v594, %v621
    %623 = vdwg.mxu0
    %vm624 = vcmp.gt.f32.partialorder %v619, 0.0
    %vm625 = vcmp.gt.f32.partialorder %v622, 0.0
    %v626 = vmul.f32 %v619, 0.2
    %v627 = vmul.f32 %v622, 0.2
    %v628 = vsel %vm624, %v619, %v626
    %v629 = vsel %vm625, %v622, %v627
    %v630 = vsel %vm189, %v628, %v581
    %v631 = vsel %vm189, %v629, %v583
    %v633 = vsel %vm189, %v582, 0
    %v636 = vsel %vm189, %v584, 0
    %638 = vmatpush.msra.mxu0 %v148
    %639 = vmatpush.msra.mxu0 %v147
    %640 = vmatpush.msra.mxu0 %v146
    %641 = vmatpush.msra.mxu0 %v145
    %642 = vmatpush.msra.mxu0 %v144
    %643 = vmatpush.msra.mxu0 %v143
    %644 = vmatpush.msra.mxu0 %v142
    %645 = vmatpush.msra.mxu0 %v141
    %646 = vmatpush.msra.mxu0 %v140
    %647 = vmatpush.msra.mxu0 %v139
    %648 = vmatpush.msra.mxu0 %v138
    %649 = vmatpush.msra.mxu0 %v137
    %650 = vmatpush.msra.mxu0 %v136
    %651 = vmatpush.msra.mxu0 %v135
    %652 = vmatpush.msra.mxu0 %v134
    %653 = vmatpush.msra.mxu0 %v133
    %654 = vmatmul.f32.gmra.mxu0 %v630
    %v655 = vpop.f32.mrf.mxu0
    %v656 = vadd.f32 %v132, %v655
    %657 = vmatmul.f32.gmra.mxu0 %v631
    %v658 = vpop.f32.mrf.mxu0
    %v659 = vadd.f32 %v132, %v658
    %660 = vdwg.mxu0
    %661 = vmatpush.msra.mxu0 0.0
    %662 = vmatpush.msra.mxu0 0.0
    %663 = vmatpush.msra.mxu0 0.0
    %664 = vmatpush.msra.mxu0 0.0
    %665 = vmatpush.msra.mxu0 0.0
    %666 = vmatpush.msra.mxu0 0.0
    %667 = vmatpush.msra.mxu0 0.0
    %668 = vmatpush.msra.mxu0 0.0
    %669 = vmatpush.msra.mxu0 %v156
    %670 = vmatpush.msra.mxu0 %v155
    %671 = vmatpush.msra.mxu0 %v154
    %672 = vmatpush.msra.mxu0 %v153
    %673 = vmatpush.msra.mxu0 %v152
    %674 = vmatpush.msra.mxu0 %v151
    %675 = vmatpush.msra.mxu0 %v150
    %676 = vmatpush.msra.mxu0 %v149
    %677 = vmatmul.f32.gmra.mxu0 %v633
    %v678 = vpop.f32.mrf.mxu0
    %v679 = vadd.f32 %v656, %v678
    %680 = vmatmul.f32.gmra.mxu0 %v636
    %v681 = vpop.f32.mrf.mxu0
    %v682 = vadd.f32 %v659, %v681
    %683 = vdwg.mxu0
    %684 = vst [vmem:[%s7] sm:$0xff] %v679
    %685 = vst [vmem:[%s7 + $0x8] sm:$0xff] %v682
    %687 = vrot.lane.b32.xlu0 %v682, 96
    %v688 = vpop.permute.xlu0 %687
    %690 = vrot.lane.b32.xlu0 %v679, 96
    %v691 = vpop.permute.xlu0 %690
    %692 = vrot.lane.b32.xlu0 %v688, 32
    %v693 = vpop.permute.xlu0 %692
    %694 = vrot.lane.b32.xlu0 %v691, 32
    %v695 = vpop.permute.xlu0 %694
    %699 = vrot.lane.b32.xlu0 %v679, 32
    %v700 = vpop.permute.xlu0 %699
    %701 = vrot.lane.b32.xlu0 %v682, 32
    %v702 = vpop.permute.xlu0 %701
    %703 = vrot.lane.b32.xlu0 0.0, 32
    %v704 = vpop.permute.xlu0 %703
    %708 = vrot.lane.b32.xlu0 %v130, 96
    %v709 = vpop.permute.xlu0 %708
    %710 = vrot.lane.b32.xlu0 %v129, 96
    %v711 = vpop.permute.xlu0 %710
    %712 = vrot.lane.b32.xlu0 0.0, 96
    %v713 = vpop.permute.xlu0 %712
    %717 = vrot.lane.b32.xlu0 %v679, 64
    %v718 = vpop.permute.xlu0 %717
    %719 = vrot.lane.b32.xlu0 %v682, 64
    %v720 = vpop.permute.xlu0 %719
    %721 = vrot.lane.b32.xlu0 0.0, 64
    %v722 = vpop.permute.xlu0 %721
    %v726 = vsel %vm161, %v679, %v159
    %v727 = vsel %vm161, %v682, %v165
    %v728 = vsel %vm161, %v129, %v693
    %v729 = vsel %vm161, %v130, %v695
    %v730 = vsel %vm161, %v129, %v695
    %v731 = vsel %vm161, %v130, %v693
    %v732 = vsel %vm189, %v726, %v700
    %v733 = vsel %vm189, %v727, %v702
    %v734 = vsel %vm189, %v728, %v704
    %v735 = vsel %vm189, %v729, %v704
    %v736 = vsel %vm189, %v730, %v704
    %v737 = vsel %vm189, %v731, %v704
    %vm738 = vcmask 785408
    %v739 = vsel %vm738, %v732, %v709
    %v740 = vsel %vm738, %v733, %v711
    %v741 = vsel %vm738, %v734, %v713
    %v742 = vsel %vm738, %v735, %v713
    %v743 = vsel %vm738, %v736, %v713
    %v744 = vsel %vm738, %v737, %v713
    %v745 = vsel %vm161, %v718, %v159
    %v746 = vsel %vm161, %v720, %v165
    %v747 = vsel %vm161, %v722, %v704
    %v748 = vld [vmem:[#allocation7] sm:$0xff]
    %v749 = vld [vmem:[#allocation7 + $0x8] sm:$0xff]
    %v750 = vld [vmem:[#allocation7 + $0x10] sm:$0xff]
    %v751 = vld [vmem:[#allocation7 + $0x18] sm:$0xff]
    %v752 = vld [vmem:[#allocation7 + $0x20] sm:$0xff]
    %v753 = vld [vmem:[#allocation7 + $0x28] sm:$0xff]
    %v754 = vld [vmem:[#allocation7 + $0x30] sm:$0xff]
    %v755 = vld [vmem:[#allocation7 + $0x38] sm:$0xff]
    %v756 = vld [vmem:[#allocation7 + $0x40] sm:$0xff]
    %v757 = vld [vmem:[#allocation7 + $0x48] sm:$0xff]
    %v758 = vld [vmem:[#allocation7 + $0x50] sm:$0xff]
    %v759 = vld [vmem:[#allocation7 + $0x58] sm:$0xff]
    %v760 = vld [vmem:[#allocation7 + $0x60] sm:$0xff]
    %v761 = vld [vmem:[#allocation7 + $0x68] sm:$0xff]
    %v762 = vld [vmem:[#allocation7 + $0x70] sm:$0xff]
    %v763 = vld [vmem:[#allocation7 + $0x78] sm:$0xff]
    %v764 = vld [vmem:[#allocation7 + $0x80] sm:$0xff]
    %v765 = vld [vmem:[#allocation7 + $0x88] sm:$0xff]
    %v766 = vld [vmem:[#allocation7 + $0x90] sm:$0xff]
    %v767 = vld [vmem:[#allocation7 + $0x98] sm:$0xff]
    %v768 = vld [vmem:[#allocation7 + $0xa0] sm:$0xff]
    %v769 = vld [vmem:[#allocation7 + $0xa8] sm:$0xff]
    %v770 = vld [vmem:[#allocation7 + $0xb0] sm:$0xff]
    %v771 = vld [vmem:[#allocation7 + $0xb8] sm:$0xff]
    %v772 = vld [vmem:[#allocation7 + $0xc0] sm:$0xff]
    %v773 = vld [vmem:[#allocation7 + $0xc8] sm:$0xff]
    %v774 = vld [vmem:[#allocation7 + $0xd0] sm:$0xff]
    %v775 = vld [vmem:[#allocation7 + $0xd8] sm:$0xff]
    %v776 = vld [vmem:[#allocation7 + $0xe0] sm:$0xff]
    %v777 = vld [vmem:[#allocation7 + $0xe8] sm:$0xff]
    %v778 = vld [vmem:[#allocation7 + $0xf0] sm:$0xff]
    %v779 = vld [vmem:[#allocation7 + $0xf8] sm:$0xff]
    %v780 = vld [vmem:[#allocation7 + $0x100] sm:$0xff]
    %v781 = vld [vmem:[#allocation7 + $0x108] sm:$0xff]
    %v782 = vld [vmem:[#allocation7 + $0x110] sm:$0xff]
    %v783 = vld [vmem:[#allocation7 + $0x118] sm:$0xff]
    %v784 = vld [vmem:[#allocation7 + $0x120] sm:$0xff]
    %v785 = vld [vmem:[#allocation7 + $0x128] sm:$0xff]
    %v786 = vld [vmem:[#allocation7 + $0x130] sm:$0xff]
    %v787 = vld [vmem:[#allocation7 + $0x138] sm:$0xff]
    %v788 = vld [vmem:[#allocation7 + $0x140] sm:$0xff]
    %v789 = vld [vmem:[#allocation7 + $0x148] sm:$0xff]
    %v790 = vld [vmem:[#allocation7 + $0x150] sm:$0xff]
    %v791 = vld [vmem:[#allocation7 + $0x158] sm:$0xff]
    %v792 = vld [vmem:[#allocation7 + $0x160] sm:$0xff]
    %v793 = vld [vmem:[#allocation7 + $0x168] sm:$0xff]
    %v794 = vld [vmem:[#allocation7 + $0x170] sm:$0xff]
    %v795 = vld [vmem:[#allocation7 + $0x178] sm:$0xff]
    %v797 = vsel %vm189, %v745, 0
    %v800 = vsel %vm189, %v746, 0
    %v803 = vsel %vm189, %v747, 0
    %805 = vmatpush.msra.mxu0 %v778
    %806 = vmatpush.msra.mxu0 %v776
    %807 = vmatpush.msra.mxu0 %v774
    %808 = vmatpush.msra.mxu0 %v772
    %809 = vmatpush.msra.mxu0 %v770
    %810 = vmatpush.msra.mxu0 %v768
    %811 = vmatpush.msra.mxu0 %v766
    %812 = vmatpush.msra.mxu0 %v764
    %813 = vmatpush.msra.mxu0 %v762
    %814 = vmatpush.msra.mxu0 %v760
    %815 = vmatpush.msra.mxu0 %v758
    %816 = vmatpush.msra.mxu0 %v756
    %817 = vmatpush.msra.mxu0 %v754
    %818 = vmatpush.msra.mxu0 %v752
    %819 = vmatpush.msra.mxu0 %v750
    %820 = vmatpush.msra.mxu0 %v748
    %821 = vmatmul.f32.gmra.mxu0 %v739
    %v822 = vpop.f32.mrf.mxu0
    %v823 = vadd.f32 %v185, %v822
    %824 = vmatmul.f32.gmra.mxu0 %v740
    %v825 = vpop.f32.mrf.mxu0
    %v826 = vadd.f32 %v185, %v825
    %827 = vmatmul.f32.gmra.mxu0 %v741
    %v828 = vpop.f32.mrf.mxu0
    %v829 = vadd.f32 %v185, %v828
    %830 = vmatmul.f32.gmra.mxu0 %v742
    %v831 = vpop.f32.mrf.mxu0
    %v832 = vadd.f32 %v185, %v831
    %833 = vmatmul.f32.gmra.mxu0 %v743
    %v834 = vpop.f32.mrf.mxu0
    %v835 = vadd.f32 %v185, %v834
    %836 = vmatmul.f32.gmra.mxu0 %v744
    %v837 = vpop.f32.mrf.mxu0
    %v838 = vadd.f32 %v185, %v837
    %839 = vdwg.mxu0
    %840 = vmatpush.msra.mxu0 0.0
    %841 = vmatpush.msra.mxu0 0.0
    %842 = vmatpush.msra.mxu0 0.0
    %843 = vmatpush.msra.mxu0 0.0
    %844 = vmatpush.msra.mxu0 0.0
    %845 = vmatpush.msra.mxu0 0.0
    %846 = vmatpush.msra.mxu0 0.0
    %847 = vmatpush.msra.mxu0 0.0
    %848 = vmatpush.msra.mxu0 %v794
    %849 = vmatpush.msra.mxu0 %v792
    %850 = vmatpush.msra.mxu0 %v790
    %851 = vmatpush.msra.mxu0 %v788
    %852 = vmatpush.msra.mxu0 %v786
    %853 = vmatpush.msra.mxu0 %v784
    %854 = vmatpush.msra.mxu0 %v782
    %855 = vmatpush.msra.mxu0 %v780
    %856 = vmatmul.f32.gmra.mxu0 %v797
    %v857 = vpop.f32.mrf.mxu0
    %v858 = vadd.f32 %v823, %v857
    %859 = vmatmul.f32.gmra.mxu0 %v800
    %v860 = vpop.f32.mrf.mxu0
    %v861 = vadd.f32 %v826, %v860
    %862 = vmatmul.f32.gmra.mxu0 %v803
    %v863 = vpop.f32.mrf.mxu0
    %v864 = vadd.f32 %v829, %v863
    %865 = vmatmul.f32.gmra.mxu0 %v803
    %v866 = vpop.f32.mrf.mxu0
    %v867 = vadd.f32 %v832, %v866
    %868 = vmatmul.f32.gmra.mxu0 %v803
    %v869 = vpop.f32.mrf.mxu0
    %v870 = vadd.f32 %v835, %v869
    %871 = vmatmul.f32.gmra.mxu0 %v803
    %v872 = vpop.f32.mrf.mxu0
    %v873 = vadd.f32 %v838, %v872
    %874 = vdwg.mxu0
    %875 = vmatpush.msra.mxu0 %v779
    %876 = vmatpush.msra.mxu0 %v777
    %877 = vmatpush.msra.mxu0 %v775
    %878 = vmatpush.msra.mxu0 %v773
    %879 = vmatpush.msra.mxu0 %v771
    %880 = vmatpush.msra.mxu0 %v769
    %881 = vmatpush.msra.mxu0 %v767
    %882 = vmatpush.msra.mxu0 %v765
    %883 = vmatpush.msra.mxu0 %v763
    %884 = vmatpush.msra.mxu0 %v761
    %885 = vmatpush.msra.mxu0 %v759
    %886 = vmatpush.msra.mxu0 %v757
    %887 = vmatpush.msra.mxu0 %v755
    %888 = vmatpush.msra.mxu0 %v753
    %889 = vmatpush.msra.mxu0 %v751
    %890 = vmatpush.msra.mxu0 %v749
    %891 = vmatmul.f32.gmra.mxu0 %v739
    %v892 = vpop.f32.mrf.mxu0
    %v893 = vadd.f32 %v186, %v892
    %894 = vmatmul.f32.gmra.mxu0 %v740
    %v895 = vpop.f32.mrf.mxu0
    %v896 = vadd.f32 %v186, %v895
    %897 = vmatmul.f32.gmra.mxu0 %v741
    %v898 = vpop.f32.mrf.mxu0
    %v899 = vadd.f32 %v186, %v898
    %900 = vmatmul.f32.gmra.mxu0 %v742
    %v901 = vpop.f32.mrf.mxu0
    %v902 = vadd.f32 %v186, %v901
    %903 = vmatmul.f32.gmra.mxu0 %v743
    %v904 = vpop.f32.mrf.mxu0
    %v905 = vadd.f32 %v186, %v904
    %906 = vmatmul.f32.gmra.mxu0 %v744
    %v907 = vpop.f32.mrf.mxu0
    %v908 = vadd.f32 %v186, %v907
    %909 = vdwg.mxu0
    %910 = vmatpush.msra.mxu0 0.0
    %911 = vmatpush.msra.mxu0 0.0
    %912 = vmatpush.msra.mxu0 0.0
    %913 = vmatpush.msra.mxu0 0.0
    %914 = vmatpush.msra.mxu0 0.0
    %915 = vmatpush.msra.mxu0 0.0
    %916 = vmatpush.msra.mxu0 0.0
    %917 = vmatpush.msra.mxu0 0.0
    %918 = vmatpush.msra.mxu0 %v795
    %919 = vmatpush.msra.mxu0 %v793
    %920 = vmatpush.msra.mxu0 %v791
    %921 = vmatpush.msra.mxu0 %v789
    %922 = vmatpush.msra.mxu0 %v787
    %923 = vmatpush.msra.mxu0 %v785
    %924 = vmatpush.msra.mxu0 %v783
    %925 = vmatpush.msra.mxu0 %v781
    %926 = vmatmul.f32.gmra.mxu0 %v797
    %v927 = vpop.f32.mrf.mxu0
    %v928 = vadd.f32 %v893, %v927
    %929 = vmatmul.f32.gmra.mxu0 %v800
    %v930 = vpop.f32.mrf.mxu0
    %v931 = vadd.f32 %v896, %v930
    %932 = vmatmul.f32.gmra.mxu0 %v803
    %v933 = vpop.f32.mrf.mxu0
    %v934 = vadd.f32 %v899, %v933
    %935 = vmatmul.f32.gmra.mxu0 %v803
    %v936 = vpop.f32.mrf.mxu0
    %v937 = vadd.f32 %v902, %v936
    %938 = vmatmul.f32.gmra.mxu0 %v803
    %v939 = vpop.f32.mrf.mxu0
    %v940 = vadd.f32 %v905, %v939
    %941 = vmatmul.f32.gmra.mxu0 %v803
    %v942 = vpop.f32.mrf.mxu0
    %v943 = vadd.f32 %v908, %v942
    %944 = vdwg.mxu0
    %vm945 = vcmp.gt.f32.partialorder %v858, 0.0
    %vm946 = vcmp.gt.f32.partialorder %v928, 0.0
    %vm947 = vcmp.gt.f32.partialorder %v861, 0.0
    %vm948 = vcmp.gt.f32.partialorder %v931, 0.0
    %vm949 = vcmp.gt.f32.partialorder %v864, 0.0
    %vm950 = vcmp.gt.f32.partialorder %v934, 0.0
    %vm951 = vcmp.gt.f32.partialorder %v867, 0.0
    %vm952 = vcmp.gt.f32.partialorder %v937, 0.0
    %vm953 = vcmp.gt.f32.partialorder %v870, 0.0
    %vm954 = vcmp.gt.f32.partialorder %v940, 0.0
    %vm955 = vcmp.gt.f32.partialorder %v873, 0.0
    %vm956 = vcmp.gt.f32.partialorder %v943, 0.0
    %v957 = vmul.f32 %v858, 0.2
    %v958 = vmul.f32 %v928, 0.2
    %v959 = vmul.f32 %v861, 0.2
    %v960 = vmul.f32 %v931, 0.2
    %v961 = vmul.f32 %v864, 0.2
    %v962 = vmul.f32 %v934, 0.2
    %v963 = vmul.f32 %v867, 0.2
    %v964 = vmul.f32 %v937, 0.2
    %v965 = vmul.f32 %v870, 0.2
    %v966 = vmul.f32 %v940, 0.2
    %v967 = vmul.f32 %v873, 0.2
    %v968 = vmul.f32 %v943, 0.2
    %v969 = vsel %vm945, %v858, %v957
    %v970 = vsel %vm946, %v928, %v958
    %v971 = vsel %vm947, %v861, %v959
    %v972 = vsel %vm948, %v931, %v960
    %v973 = vsel %vm949, %v864, %v961
    %v974 = vsel %vm950, %v934, %v962
    %v975 = vsel %vm951, %v867, %v963
    %v976 = vsel %vm952, %v937, %v964
    %v977 = vsel %vm953, %v870, %v965
    %v978 = vsel %vm954, %v940, %v966
    %v979 = vsel %vm955, %v873, %v967
    %v980 = vsel %vm956, %v943, %v968
    %v981 = vld [vmem:[#allocation9] sm:$0xff]
    %v982 = vld [vmem:[#allocation9 + $0x8] sm:$0xff]
    %v983 = vld [vmem:[#allocation9 + $0x10] sm:$0xff]
    %v984 = vld [vmem:[#allocation9 + $0x18] sm:$0xff]
    %v985 = vld [vmem:[#allocation9 + $0x20] sm:$0xff]
    %v986 = vld [vmem:[#allocation9 + $0x28] sm:$0xff]
    %v987 = vld [vmem:[#allocation9 + $0x30] sm:$0xff]
    %v988 = vld [vmem:[#allocation9 + $0x38] sm:$0xff]
    %v989 = vld [vmem:[#allocation9 + $0x40] sm:$0xff]
    %v990 = vld [vmem:[#allocation9 + $0x48] sm:$0xff]
    %v991 = vld [vmem:[#allocation9 + $0x50] sm:$0xff]
    %v992 = vld [vmem:[#allocation9 + $0x58] sm:$0xff]
    %v993 = vld [vmem:[#allocation9 + $0x60] sm:$0xff]
    %v994 = vld [vmem:[#allocation9 + $0x68] sm:$0xff]
    %v995 = vld [vmem:[#allocation9 + $0x70] sm:$0xff]
    %v996 = vld [vmem:[#allocation9 + $0x78] sm:$0xff]
    %v997 = vld [vmem:[#allocation9 + $0x80] sm:$0xff]
    %v998 = vld [vmem:[#allocation9 + $0x88] sm:$0xff]
    %v999 = vld [vmem:[#allocation9 + $0x90] sm:$0xff]
    %v1000 = vld [vmem:[#allocation9 + $0x98] sm:$0xff]
    %v1001 = vld [vmem:[#allocation9 + $0xa0] sm:$0xff]
    %v1002 = vld [vmem:[#allocation9 + $0xa8] sm:$0xff]
    %v1003 = vld [vmem:[#allocation9 + $0xb0] sm:$0xff]
    %v1004 = vld [vmem:[#allocation9 + $0xb8] sm:$0xff]
    %v1005 = vld [vmem:[#allocation9 + $0xc0] sm:$0xff]
    %v1006 = vld [vmem:[#allocation9 + $0xc8] sm:$0xff]
    %v1007 = vld [vmem:[#allocation9 + $0xd0] sm:$0xff]
    %v1008 = vld [vmem:[#allocation9 + $0xd8] sm:$0xff]
    %v1009 = vld [vmem:[#allocation9 + $0xe0] sm:$0xff]
    %v1010 = vld [vmem:[#allocation9 + $0xe8] sm:$0xff]
    %v1011 = vld [vmem:[#allocation9 + $0xf0] sm:$0xff]
    %v1012 = vld [vmem:[#allocation9 + $0xf8] sm:$0xff]
    %v1013 = vld [vmem:[#allocation9 + $0x100] sm:$0xff]
    %v1014 = vld [vmem:[#allocation9 + $0x108] sm:$0xff]
    %v1015 = vld [vmem:[#allocation9 + $0x110] sm:$0xff]
    %v1016 = vld [vmem:[#allocation9 + $0x118] sm:$0xff]
    %v1017 = vld [vmem:[#allocation9 + $0x120] sm:$0xff]
    %v1018 = vld [vmem:[#allocation9 + $0x128] sm:$0xff]
    %v1019 = vld [vmem:[#allocation9 + $0x130] sm:$0xff]
    %v1020 = vld [vmem:[#allocation9 + $0x138] sm:$0xff]
    %v1021 = vld [vmem:[#allocation9 + $0x140] sm:$0xff]
    %v1022 = vld [vmem:[#allocation9 + $0x148] sm:$0xff]
    %v1023 = vld [vmem:[#allocation9 + $0x150] sm:$0xff]
    %v1024 = vld [vmem:[#allocation9 + $0x158] sm:$0xff]
    %v1025 = vld [vmem:[#allocation9 + $0x160] sm:$0xff]
    %v1026 = vld [vmem:[#allocation9 + $0x168] sm:$0xff]
    %v1027 = vld [vmem:[#allocation9 + $0x170] sm:$0xff]
    %v1028 = vld [vmem:[#allocation9 + $0x178] sm:$0xff]
    %v1029 = vld [vmem:[%s302] ss:$8 sm:$0x3]
    %v1031 = vperm.slane %v1029, 0
    %v1032 = vperm.slane %v1029, 1
    %v1036 = vsel %vm189, %v970, 0
    %v1039 = vsel %vm189, %v972, 0
    %v1042 = vsel %vm189, %v974, 0
    %v1045 = vsel %vm189, %v976, 0
    %v1048 = vsel %vm189, %v978, 0
    %v1051 = vsel %vm189, %v980, 0
    %1053 = vmatpush.msra.mxu0 %v1011
    %1054 = vmatpush.msra.mxu0 %v1009
    %1055 = vmatpush.msra.mxu0 %v1007
    %1056 = vmatpush.msra.mxu0 %v1005
    %1057 = vmatpush.msra.mxu0 %v1003
    %1058 = vmatpush.msra.mxu0 %v1001
    %1059 = vmatpush.msra.mxu0 %v999
    %1060 = vmatpush.msra.mxu0 %v997
    %1061 = vmatpush.msra.mxu0 %v995
    %1062 = vmatpush.msra.mxu0 %v993
    %1063 = vmatpush.msra.mxu0 %v991
    %1064 = vmatpush.msra.mxu0 %v989
    %1065 = vmatpush.msra.mxu0 %v987
    %1066 = vmatpush.msra.mxu0 %v985
    %1067 = vmatpush.msra.mxu0 %v983
    %1068 = vmatpush.msra.mxu0 %v981
    %1069 = vmatmul.f32.gmra.mxu0 %v969
    %v1070 = vpop.f32.mrf.mxu0
    %v1071 = vadd.f32 %v1031, %v1070
    %1072 = vmatmul.f32.gmra.mxu0 %v971
    %v1073 = vpop.f32.mrf.mxu0
    %v1074 = vadd.f32 %v1031, %v1073
    %1075 = vmatmul.f32.gmra.mxu0 %v973
    %v1076 = vpop.f32.mrf.mxu0
    %v1077 = vadd.f32 %v1031, %v1076
    %1078 = vmatmul.f32.gmra.mxu0 %v975
    %v1079 = vpop.f32.mrf.mxu0
    %v1080 = vadd.f32 %v1031, %v1079
    %1081 = vmatmul.f32.gmra.mxu0 %v977
    %v1082 = vpop.f32.mrf.mxu0
    %v1083 = vadd.f32 %v1031, %v1082
    %1084 = vmatmul.f32.gmra.mxu0 %v979
    %v1085 = vpop.f32.mrf.mxu0
    %v1086 = vadd.f32 %v1031, %v1085
    %1087 = vdwg.mxu0
    %1088 = vmatpush.msra.mxu0 0.0
    %1089 = vmatpush.msra.mxu0 0.0
    %1090 = vmatpush.msra.mxu0 0.0
    %1091 = vmatpush.msra.mxu0 0.0
    %1092 = vmatpush.msra.mxu0 0.0
    %1093 = vmatpush.msra.mxu0 0.0
    %1094 = vmatpush.msra.mxu0 0.0
    %1095 = vmatpush.msra.mxu0 0.0
    %1096 = vmatpush.msra.mxu0 %v1027
    %1097 = vmatpush.msra.mxu0 %v1025
    %1098 = vmatpush.msra.mxu0 %v1023
    %1099 = vmatpush.msra.mxu0 %v1021
    %1100 = vmatpush.msra.mxu0 %v1019
    %1101 = vmatpush.msra.mxu0 %v1017
    %1102 = vmatpush.msra.mxu0 %v1015
    %1103 = vmatpush.msra.mxu0 %v1013
    %1104 = vmatmul.f32.gmra.mxu0 %v1036
    %v1105 = vpop.f32.mrf.mxu0
    %v1106 = vadd.f32 %v1071, %v1105
    %1107 = vmatmul.f32.gmra.mxu0 %v1039
    %v1108 = vpop.f32.mrf.mxu0
    %v1109 = vadd.f32 %v1074, %v1108
    %1110 = vmatmul.f32.gmra.mxu0 %v1042
    %v1111 = vpop.f32.mrf.mxu0
    %v1112 = vadd.f32 %v1077, %v1111
    %1113 = vmatmul.f32.gmra.mxu0 %v1045
    %v1114 = vpop.f32.mrf.mxu0
    %v1115 = vadd.f32 %v1080, %v1114
    %1116 = vmatmul.f32.gmra.mxu0 %v1048
    %v1117 = vpop.f32.mrf.mxu0
    %v1118 = vadd.f32 %v1083, %v1117
    %1119 = vmatmul.f32.gmra.mxu0 %v1051
    %v1120 = vpop.f32.mrf.mxu0
    %v1121 = vadd.f32 %v1086, %v1120
    %1122 = vdwg.mxu0
    %1123 = vmatpush.msra.mxu0 %v1012
    %1124 = vmatpush.msra.mxu0 %v1010
    %1125 = vmatpush.msra.mxu0 %v1008
    %1126 = vmatpush.msra.mxu0 %v1006
    %1127 = vmatpush.msra.mxu0 %v1004
    %1128 = vmatpush.msra.mxu0 %v1002
    %1129 = vmatpush.msra.mxu0 %v1000
    %1130 = vmatpush.msra.mxu0 %v998
    %1131 = vmatpush.msra.mxu0 %v996
    %1132 = vmatpush.msra.mxu0 %v994
    %1133 = vmatpush.msra.mxu0 %v992
    %1134 = vmatpush.msra.mxu0 %v990
    %1135 = vmatpush.msra.mxu0 %v988
    %1136 = vmatpush.msra.mxu0 %v986
    %1137 = vmatpush.msra.mxu0 %v984
    %1138 = vmatpush.msra.mxu0 %v982
    %1139 = vmatmul.f32.gmra.mxu0 %v969
    %v1140 = vpop.f32.mrf.mxu0
    %v1141 = vadd.f32 %v1032, %v1140
    %1142 = vmatmul.f32.gmra.mxu0 %v971
    %v1143 = vpop.f32.mrf.mxu0
    %v1144 = vadd.f32 %v1032, %v1143
    %1145 = vmatmul.f32.gmra.mxu0 %v973
    %v1146 = vpop.f32.mrf.mxu0
    %v1147 = vadd.f32 %v1032, %v1146
    %1148 = vmatmul.f32.gmra.mxu0 %v975
    %v1149 = vpop.f32.mrf.mxu0
    %v1150 = vadd.f32 %v1032, %v1149
    %1151 = vmatmul.f32.gmra.mxu0 %v977
    %v1152 = vpop.f32.mrf.mxu0
    %v1153 = vadd.f32 %v1032, %v1152
    %1154 = vmatmul.f32.gmra.mxu0 %v979
    %v1155 = vpop.f32.mrf.mxu0
    %v1156 = vadd.f32 %v1032, %v1155
    %1157 = vdwg.mxu0
    %1158 = vmatpush.msra.mxu0 0.0
    %1159 = vmatpush.msra.mxu0 0.0
    %1160 = vmatpush.msra.mxu0 0.0
    %1161 = vmatpush.msra.mxu0 0.0
    %1162 = vmatpush.msra.mxu0 0.0
    %1163 = vmatpush.msra.mxu0 0.0
    %1164 = vmatpush.msra.mxu0 0.0
    %1165 = vmatpush.msra.mxu0 0.0
    %1166 = vmatpush.msra.mxu0 %v1028
    %1167 = vmatpush.msra.mxu0 %v1026
    %1168 = vmatpush.msra.mxu0 %v1024
    %1169 = vmatpush.msra.mxu0 %v1022
    %1170 = vmatpush.msra.mxu0 %v1020
    %1171 = vmatpush.msra.mxu0 %v1018
    %1172 = vmatpush.msra.mxu0 %v1016
    %1173 = vmatpush.msra.mxu0 %v1014
    %1174 = vmatmul.f32.gmra.mxu0 %v1036
    %v1175 = vpop.f32.mrf.mxu0
    %v1176 = vadd.f32 %v1141, %v1175
    %1177 = vmatmul.f32.gmra.mxu0 %v1039
    %v1178 = vpop.f32.mrf.mxu0
    %v1179 = vadd.f32 %v1144, %v1178
    %1180 = vmatmul.f32.gmra.mxu0 %v1042
    %v1181 = vpop.f32.mrf.mxu0
    %v1182 = vadd.f32 %v1147, %v1181
    %1183 = vmatmul.f32.gmra.mxu0 %v1045
    %v1184 = vpop.f32.mrf.mxu0
    %v1185 = vadd.f32 %v1150, %v1184
    %1186 = vmatmul.f32.gmra.mxu0 %v1048
    %v1187 = vpop.f32.mrf.mxu0
    %v1188 = vadd.f32 %v1153, %v1187
    %1189 = vmatmul.f32.gmra.mxu0 %v1051
    %v1190 = vpop.f32.mrf.mxu0
    %v1191 = vadd.f32 %v1156, %v1190
    %1192 = vdwg.mxu0
    %vm1193 = vcmp.gt.f32.partialorder %v1106, 0.0
    %vm1194 = vcmp.gt.f32.partialorder %v1176, 0.0
    %vm1195 = vcmp.gt.f32.partialorder %v1109, 0.0
    %vm1196 = vcmp.gt.f32.partialorder %v1179, 0.0
    %vm1197 = vcmp.gt.f32.partialorder %v1112, 0.0
    %vm1198 = vcmp.gt.f32.partialorder %v1182, 0.0
    %vm1199 = vcmp.gt.f32.partialorder %v1115, 0.0
    %vm1200 = vcmp.gt.f32.partialorder %v1185, 0.0
    %vm1201 = vcmp.gt.f32.partialorder %v1118, 0.0
    %vm1202 = vcmp.gt.f32.partialorder %v1188, 0.0
    %vm1203 = vcmp.gt.f32.partialorder %v1121, 0.0
    %vm1204 = vcmp.gt.f32.partialorder %v1191, 0.0
    %v1205 = vmul.f32 %v1106, 0.2
    %v1206 = vmul.f32 %v1176, 0.2
    %v1207 = vmul.f32 %v1109, 0.2
    %v1208 = vmul.f32 %v1179, 0.2
    %v1209 = vmul.f32 %v1112, 0.2
    %v1210 = vmul.f32 %v1182, 0.2
    %v1211 = vmul.f32 %v1115, 0.2
    %v1212 = vmul.f32 %v1185, 0.2
    %v1213 = vmul.f32 %v1118, 0.2
    %v1214 = vmul.f32 %v1188, 0.2
    %v1215 = vmul.f32 %v1121, 0.2
    %v1216 = vmul.f32 %v1191, 0.2
    %v1217 = vsel %vm1193, %v1106, %v1205
    %v1218 = vsel %vm1194, %v1176, %v1206
    %v1219 = vsel %vm1195, %v1109, %v1207
    %v1220 = vsel %vm1196, %v1179, %v1208
    %v1221 = vsel %vm1197, %v1112, %v1209
    %v1222 = vsel %vm1198, %v1182, %v1210
    %v1223 = vsel %vm1199, %v1115, %v1211
    %v1224 = vsel %vm1200, %v1185, %v1212
    %v1225 = vsel %vm1201, %v1118, %v1213
    %v1226 = vsel %vm1202, %v1188, %v1214
    %v1227 = vsel %vm1203, %v1121, %v1215
    %v1228 = vsel %vm1204, %v1191, %v1216
    %v1229 = vld [vmem:[%s419] sm:$0xff]
    %v1230 = vld [vmem:[%s419 + $0x8] sm:$0xff]
    %v1231 = vld [vmem:[%s419 + $0x10] sm:$0xff]
    %v1232 = vld [vmem:[%s419 + $0x18] sm:$0xff]
    %v1233 = vld [vmem:[%s419 + $0x20] sm:$0xff]
    %v1234 = vld [vmem:[%s419 + $0x28] sm:$0xff]
    %v1235 = vld [vmem:[%s419 + $0x30] sm:$0xff]
    %v1236 = vld [vmem:[%s419 + $0x38] sm:$0xff]
    %v1237 = vld [vmem:[%s419 + $0x40] sm:$0xff]
    %v1238 = vld [vmem:[%s419 + $0x48] sm:$0xff]
    %v1239 = vld [vmem:[%s419 + $0x50] sm:$0xff]
    %v1240 = vld [vmem:[%s419 + $0x58] sm:$0xff]
    %v1241 = vld [vmem:[%s419 + $0x60] sm:$0xff]
    %v1242 = vld [vmem:[%s419 + $0x68] sm:$0xff]
    %v1243 = vld [vmem:[%s419 + $0x70] sm:$0xff]
    %v1244 = vld [vmem:[%s419 + $0x78] sm:$0xff]
    %v1245 = vld [vmem:[%s419 + $0x80] sm:$0xff]
    %v1246 = vld [vmem:[%s419 + $0x88] sm:$0xff]
    %v1247 = vld [vmem:[%s419 + $0x90] sm:$0xff]
    %v1248 = vld [vmem:[%s419 + $0x98] sm:$0xff]
    %v1249 = vld [vmem:[%s419 + $0xa0] sm:$0xff]
    %v1250 = vld [vmem:[%s419 + $0xa8] sm:$0xff]
    %v1251 = vld [vmem:[%s419 + $0xb0] sm:$0xff]
    %v1252 = vld [vmem:[%s419 + $0xb8] sm:$0xff]
    %v1253 = vld [vmem:[%s419 + $0xc0] sm:$0xff]
    %v1254 = vld [vmem:[%s419 + $0xc8] sm:$0xff]
    %v1255 = vld [vmem:[%s419 + $0xd0] sm:$0xff]
    %v1256 = vld [vmem:[%s419 + $0xd8] sm:$0xff]
    %v1257 = vld [vmem:[%s419 + $0xe0] sm:$0xff]
    %v1258 = vld [vmem:[%s419 + $0xe8] sm:$0xff]
    %v1259 = vld [vmem:[%s419 + $0xf0] sm:$0xff]
    %v1260 = vld [vmem:[%s419 + $0xf8] sm:$0xff]
    %v1261 = vld [vmem:[%s419 + $0x100] sm:$0xff]
    %v1262 = vld [vmem:[%s419 + $0x108] sm:$0xff]
    %v1263 = vld [vmem:[%s419 + $0x110] sm:$0xff]
    %v1264 = vld [vmem:[%s419 + $0x118] sm:$0xff]
    %v1265 = vld [vmem:[%s419 + $0x120] sm:$0xff]
    %v1266 = vld [vmem:[%s419 + $0x128] sm:$0xff]
    %v1267 = vld [vmem:[%s419 + $0x130] sm:$0xff]
    %v1268 = vld [vmem:[%s419 + $0x138] sm:$0xff]
    %v1269 = vld [vmem:[%s419 + $0x140] sm:$0xff]
    %v1270 = vld [vmem:[%s419 + $0x148] sm:$0xff]
    %v1271 = vld [vmem:[%s419 + $0x150] sm:$0xff]
    %v1272 = vld [vmem:[%s419 + $0x158] sm:$0xff]
    %v1273 = vld [vmem:[%s419 + $0x160] sm:$0xff]
    %v1274 = vld [vmem:[%s419 + $0x168] sm:$0xff]
    %v1275 = vld [vmem:[%s419 + $0x170] sm:$0xff]
    %v1276 = vld [vmem:[%s419 + $0x178] sm:$0xff]
    %v1277 = vld [vmem:[%s468] ss:$8 sm:$0x3]
    %v1279 = vperm.slane %v1277, 0
    %v1280 = vperm.slane %v1277, 1
    %v1284 = vsel %vm189, %v1218, 0
    %v1287 = vsel %vm189, %v1220, 0
    %v1290 = vsel %vm189, %v1222, 0
    %v1293 = vsel %vm189, %v1224, 0
    %v1296 = vsel %vm189, %v1226, 0
    %v1299 = vsel %vm189, %v1228, 0
    %1301 = vmatpush.msra.mxu0 %v1259
    %1302 = vmatpush.msra.mxu0 %v1257
    %1303 = vmatpush.msra.mxu0 %v1255
    %1304 = vmatpush.msra.mxu0 %v1253
    %1305 = vmatpush.msra.mxu0 %v1251
    %1306 = vmatpush.msra.mxu0 %v1249
    %1307 = vmatpush.msra.mxu0 %v1247
    %1308 = vmatpush.msra.mxu0 %v1245
    %1309 = vmatpush.msra.mxu0 %v1243
    %1310 = vmatpush.msra.mxu0 %v1241
    %1311 = vmatpush.msra.mxu0 %v1239
    %1312 = vmatpush.msra.mxu0 %v1237
    %1313 = vmatpush.msra.mxu0 %v1235
    %1314 = vmatpush.msra.mxu0 %v1233
    %1315 = vmatpush.msra.mxu0 %v1231
    %1316 = vmatpush.msra.mxu0 %v1229
    %1317 = vmatmul.f32.gmra.mxu0 %v1217
    %v1318 = vpop.f32.mrf.mxu0
    %v1319 = vadd.f32 %v1279, %v1318
    %1320 = vmatmul.f32.gmra.mxu0 %v1219
    %v1321 = vpop.f32.mrf.mxu0
    %v1322 = vadd.f32 %v1279, %v1321
    %1323 = vmatmul.f32.gmra.mxu0 %v1221
    %v1324 = vpop.f32.mrf.mxu0
    %v1325 = vadd.f32 %v1279, %v1324
    %1326 = vmatmul.f32.gmra.mxu0 %v1223
    %v1327 = vpop.f32.mrf.mxu0
    %v1328 = vadd.f32 %v1279, %v1327
    %1329 = vmatmul.f32.gmra.mxu0 %v1225
    %v1330 = vpop.f32.mrf.mxu0
    %v1331 = vadd.f32 %v1279, %v1330
    %1332 = vmatmul.f32.gmra.mxu0 %v1227
    %v1333 = vpop.f32.mrf.mxu0
    %v1334 = vadd.f32 %v1279, %v1333
    %1335 = vdwg.mxu0
    %1336 = vmatpush.msra.mxu0 0.0
    %1337 = vmatpush.msra.mxu0 0.0
    %1338 = vmatpush.msra.mxu0 0.0
    %1339 = vmatpush.msra.mxu0 0.0
    %1340 = vmatpush.msra.mxu0 0.0
    %1341 = vmatpush.msra.mxu0 0.0
    %1342 = vmatpush.msra.mxu0 0.0
    %1343 = vmatpush.msra.mxu0 0.0
    %1344 = vmatpush.msra.mxu0 %v1275
    %1345 = vmatpush.msra.mxu0 %v1273
    %1346 = vmatpush.msra.mxu0 %v1271
    %1347 = vmatpush.msra.mxu0 %v1269
    %1348 = vmatpush.msra.mxu0 %v1267
    %1349 = vmatpush.msra.mxu0 %v1265
    %1350 = vmatpush.msra.mxu0 %v1263
    %1351 = vmatpush.msra.mxu0 %v1261
    %1352 = vmatmul.f32.gmra.mxu0 %v1284
    %v1353 = vpop.f32.mrf.mxu0
    %v1354 = vadd.f32 %v1319, %v1353
    %1355 = vmatmul.f32.gmra.mxu0 %v1287
    %v1356 = vpop.f32.mrf.mxu0
    %v1357 = vadd.f32 %v1322, %v1356
    %1358 = vmatmul.f32.gmra.mxu0 %v1290
    %v1359 = vpop.f32.mrf.mxu0
    %v1360 = vadd.f32 %v1325, %v1359
    %1361 = vmatmul.f32.gmra.mxu0 %v1293
    %v1362 = vpop.f32.mrf.mxu0
    %v1363 = vadd.f32 %v1328, %v1362
    %1364 = vmatmul.f32.gmra.mxu0 %v1296
    %v1365 = vpop.f32.mrf.mxu0
    %v1366 = vadd.f32 %v1331, %v1365
    %1367 = vmatmul.f32.gmra.mxu0 %v1299
    %v1368 = vpop.f32.mrf.mxu0
    %v1369 = vadd.f32 %v1334, %v1368
    %1370 = vdwg.mxu0
    %1371 = vmatpush.msra.mxu0 %v1260
    %1372 = vmatpush.msra.mxu0 %v1258
    %1373 = vmatpush.msra.mxu0 %v1256
    %1374 = vmatpush.msra.mxu0 %v1254
    %1375 = vmatpush.msra.mxu0 %v1252
    %1376 = vmatpush.msra.mxu0 %v1250
    %1377 = vmatpush.msra.mxu0 %v1248
    %1378 = vmatpush.msra.mxu0 %v1246
    %1379 = vmatpush.msra.mxu0 %v1244
    %1380 = vmatpush.msra.mxu0 %v1242
    %1381 = vmatpush.msra.mxu0 %v1240
    %1382 = vmatpush.msra.mxu0 %v1238
    %1383 = vmatpush.msra.mxu0 %v1236
    %1384 = vmatpush.msra.mxu0 %v1234
    %1385 = vmatpush.msra.mxu0 %v1232
    %1386 = vmatpush.msra.mxu0 %v1230
    %1387 = vmatmul.f32.gmra.mxu0 %v1217
    %v1388 = vpop.f32.mrf.mxu0
    %v1389 = vadd.f32 %v1280, %v1388
    %1390 = vmatmul.f32.gmra.mxu0 %v1219
    %v1391 = vpop.f32.mrf.mxu0
    %v1392 = vadd.f32 %v1280, %v1391
    %1393 = vmatmul.f32.gmra.mxu0 %v1221
    %v1394 = vpop.f32.mrf.mxu0
    %v1395 = vadd.f32 %v1280, %v1394
    %1396 = vmatmul.f32.gmra.mxu0 %v1223
    %v1397 = vpop.f32.mrf.mxu0
    %v1398 = vadd.f32 %v1280, %v1397
    %1399 = vmatmul.f32.gmra.mxu0 %v1225
    %v1400 = vpop.f32.mrf.mxu0
    %v1401 = vadd.f32 %v1280, %v1400
    %1402 = vmatmul.f32.gmra.mxu0 %v1227
    %v1403 = vpop.f32.mrf.mxu0
    %v1404 = vadd.f32 %v1280, %v1403
    %1405 = vdwg.mxu0
    %1406 = vmatpush.msra.mxu0 0.0
    %1407 = vmatpush.msra.mxu0 0.0
    %1408 = vmatpush.msra.mxu0 0.0
    %1409 = vmatpush.msra.mxu0 0.0
    %1410 = vmatpush.msra.mxu0 0.0
    %1411 = vmatpush.msra.mxu0 0.0
    %1412 = vmatpush.msra.mxu0 0.0
    %1413 = vmatpush.msra.mxu0 0.0
    %1414 = vmatpush.msra.mxu0 %v1276
    %1415 = vmatpush.msra.mxu0 %v1274
    %1416 = vmatpush.msra.mxu0 %v1272
    %1417 = vmatpush.msra.mxu0 %v1270
    %1418 = vmatpush.msra.mxu0 %v1268
    %1419 = vmatpush.msra.mxu0 %v1266
    %1420 = vmatpush.msra.mxu0 %v1264
    %1421 = vmatpush.msra.mxu0 %v1262
    %1422 = vmatmul.f32.gmra.mxu0 %v1284
    %v1423 = vpop.f32.mrf.mxu0
    %v1424 = vadd.f32 %v1389, %v1423
    %1425 = vmatmul.f32.gmra.mxu0 %v1287
    %v1426 = vpop.f32.mrf.mxu0
    %v1427 = vadd.f32 %v1392, %v1426
    %1428 = vmatmul.f32.gmra.mxu0 %v1290
    %v1429 = vpop.f32.mrf.mxu0
    %v1430 = vadd.f32 %v1395, %v1429
    %1431 = vmatmul.f32.gmra.mxu0 %v1293
    %v1432 = vpop.f32.mrf.mxu0
    %v1433 = vadd.f32 %v1398, %v1432
    %1434 = vmatmul.f32.gmra.mxu0 %v1296
    %v1435 = vpop.f32.mrf.mxu0
    %v1436 = vadd.f32 %v1401, %v1435
    %1437 = vmatmul.f32.gmra.mxu0 %v1299
    %v1438 = vpop.f32.mrf.mxu0
    %v1439 = vadd.f32 %v1404, %v1438
    %1440 = vdwg.mxu0
    %vm1441 = vcmp.gt.f32.partialorder %v1354, 0.0
    %vm1442 = vcmp.gt.f32.partialorder %v1424, 0.0
    %vm1443 = vcmp.gt.f32.partialorder %v1357, 0.0
    %vm1444 = vcmp.gt.f32.partialorder %v1427, 0.0
    %vm1445 = vcmp.gt.f32.partialorder %v1360, 0.0
    %vm1446 = vcmp.gt.f32.partialorder %v1430, 0.0
    %vm1447 = vcmp.gt.f32.partialorder %v1363, 0.0
    %vm1448 = vcmp.gt.f32.partialorder %v1433, 0.0
    %vm1449 = vcmp.gt.f32.partialorder %v1366, 0.0
    %vm1450 = vcmp.gt.f32.partialorder %v1436, 0.0
    %vm1451 = vcmp.gt.f32.partialorder %v1369, 0.0
    %vm1452 = vcmp.gt.f32.partialorder %v1439, 0.0
    %v1453 = vmul.f32 %v1354, 0.2
    %v1454 = vmul.f32 %v1424, 0.2
    %v1455 = vmul.f32 %v1357, 0.2
    %v1456 = vmul.f32 %v1427, 0.2
    %v1457 = vmul.f32 %v1360, 0.2
    %v1458 = vmul.f32 %v1430, 0.2
    %v1459 = vmul.f32 %v1363, 0.2
    %v1460 = vmul.f32 %v1433, 0.2
    %v1461 = vmul.f32 %v1366, 0.2
    %v1462 = vmul.f32 %v1436, 0.2
    %v1463 = vmul.f32 %v1369, 0.2
    %v1464 = vmul.f32 %v1439, 0.2
    %v1465 = vsel %vm1441, %v1354, %v1453
    %v1466 = vsel %vm1442, %v1424, %v1454
    %v1467 = vsel %vm1443, %v1357, %v1455
    %v1468 = vsel %vm1444, %v1427, %v1456
    %v1469 = vsel %vm1445, %v1360, %v1457
    %v1470 = vsel %vm1446, %v1430, %v1458
    %v1471 = vsel %vm1447, %v1363, %v1459
    %v1472 = vsel %vm1448, %v1433, %v1460
    %v1473 = vsel %vm1449, %v1366, %v1461
    %v1474 = vsel %vm1450, %v1436, %v1462
    %v1475 = vsel %vm1451, %v1369, %v1463
    %v1476 = vsel %vm1452, %v1439, %v1464
    %v1477 = vld [vmem:[%s585] sm:$0xff]
    %v1478 = vld [vmem:[%s585 + $0x10] sm:$0xff]
    %v1479 = vld [vmem:[%s585 + $0x20] sm:$0xff]
    %v1480 = vld [vmem:[%s585 + $0x30] sm:$0xff]
    %v1481 = vld [vmem:[%s585 + $0x40] sm:$0xff]
    %v1482 = vld [vmem:[%s585 + $0x50] sm:$0xff]
    %v1483 = vld [vmem:[%s585 + $0x60] sm:$0xff]
    %v1484 = vld [vmem:[%s585 + $0x70] sm:$0xff]
    %v1485 = vld [vmem:[#allocation10 + $0x3] ss:$0 sm:$0xff]
    %v1487 = vsel %vm189, %v1465, 0
    %v1490 = vsel %vm189, %v1467, 0
    %v1493 = vsel %vm189, %v1469, 0
    %v1496 = vsel %vm189, %v1471, 0
    %v1499 = vsel %vm189, %v1473, 0
    %v1502 = vsel %vm189, %v1475, 0
    %1504 = vmatpush.msra.mxu0 0.0
    %1505 = vmatpush.msra.mxu0 0.0
    %1506 = vmatpush.msra.mxu0 0.0
    %1507 = vmatpush.msra.mxu0 0.0
    %1508 = vmatpush.msra.mxu0 0.0
    %1509 = vmatpush.msra.mxu0 0.0
    %1510 = vmatpush.msra.mxu0 0.0
    %1511 = vmatpush.msra.mxu0 0.0
    %1512 = vmatpush.msra.mxu0 %v1484
    %1513 = vmatpush.msra.mxu0 %v1483
    %1514 = vmatpush.msra.mxu0 %v1482
    %1515 = vmatpush.msra.mxu0 %v1481
    %1516 = vmatpush.msra.mxu0 %v1480
    %1517 = vmatpush.msra.mxu0 %v1479
    %1518 = vmatpush.msra.mxu0 %v1478
    %1519 = vmatpush.msra.mxu0 %v1477
    %1520 = vmatmul.f32.gmra.mxu0 %v1487
    %v1521 = vpop.f32.mrf.mxu0
    %v1522 = vadd.f32 %v1485, %v1521
    %1523 = vmatmul.f32.gmra.mxu0 %v1490
    %v1524 = vpop.f32.mrf.mxu0
    %v1525 = vadd.f32 %v1485, %v1524
    %1526 = vmatmul.f32.gmra.mxu0 %v1493
    %v1527 = vpop.f32.mrf.mxu0
    %v1528 = vadd.f32 %v1485, %v1527
    %1529 = vmatmul.f32.gmra.mxu0 %v1496
    %v1530 = vpop.f32.mrf.mxu0
    %v1531 = vadd.f32 %v1485, %v1530
    %1532 = vmatmul.f32.gmra.mxu0 %v1499
    %v1533 = vpop.f32.mrf.mxu0
    %v1534 = vadd.f32 %v1485, %v1533
    %1535 = vmatmul.f32.gmra.mxu0 %v1502
    %v1536 = vpop.f32.mrf.mxu0
    %v1537 = vadd.f32 %v1485, %v1536
    %1538 = vdwg.mxu0
    %vm1539 = vcmp.gt.f32.partialorder %v1522, 0.0
    %vm1540 = vcmp.gt.f32.partialorder %v1525, 0.0
    %vm1541 = vcmp.gt.f32.partialorder %v1528, 0.0
    %vm1542 = vcmp.gt.f32.partialorder %v1531, 0.0
    %vm1543 = vcmp.gt.f32.partialorder %v1534, 0.0
    %vm1544 = vcmp.gt.f32.partialorder %v1537, 0.0
    %v1545 = vmul.f32 %v1522, 0.2
    %v1546 = vmul.f32 %v1525, 0.2
    %v1547 = vmul.f32 %v1528, 0.2
    %v1548 = vmul.f32 %v1531, 0.2
    %v1549 = vmul.f32 %v1534, 0.2
    %v1550 = vmul.f32 %v1537, 0.2
    %v1551 = vsel %vm1539, %v1522, %v1545
    %v1552 = vsel %vm1540, %v1525, %v1546
    %v1553 = vsel %vm1541, %v1528, %v1547
    %v1554 = vsel %vm1542, %v1531, %v1548
    %v1555 = vsel %vm1543, %v1534, %v1549
    %v1556 = vsel %vm1544, %v1537, %v1550
    %v1557 = vsel %vm189, %v1551, %v1465
    %v1558 = vsel %vm189, %v1552, %v1467
    %v1559 = vsel %vm189, %v1553, %v1469
    %v1560 = vsel %vm189, %v1554, %v1471
    %v1561 = vsel %vm189, %v1555, %v1473
    %v1562 = vsel %vm189, %v1556, %v1475
    %v1564 = vsel %vm189, %v1466, 0
    %v1567 = vsel %vm189, %v1468, 0
    %v1570 = vsel %vm189, %v1470, 0
    %v1573 = vsel %vm189, %v1472, 0
    %v1576 = vsel %vm189, %v1474, 0
    %v1579 = vsel %vm189, %v1476, 0
    %1581 = vmatpush.msra.mxu0 %v148
    %1582 = vmatpush.msra.mxu0 %v147
    %1583 = vmatpush.msra.mxu0 %v146
    %1584 = vmatpush.msra.mxu0 %v145
    %1585 = vmatpush.msra.mxu0 %v144
    %1586 = vmatpush.msra.mxu0 %v143
    %1587 = vmatpush.msra.mxu0 %v142
    %1588 = vmatpush.msra.mxu0 %v141
    %1589 = vmatpush.msra.mxu0 %v140
    %1590 = vmatpush.msra.mxu0 %v139
    %1591 = vmatpush.msra.mxu0 %v138
    %1592 = vmatpush.msra.mxu0 %v137
    %1593 = vmatpush.msra.mxu0 %v136
    %1594 = vmatpush.msra.mxu0 %v135
    %1595 = vmatpush.msra.mxu0 %v134
    %1596 = vmatpush.msra.mxu0 %v133
    %1597 = vmatmul.f32.gmra.mxu0 %v1557
    %v1598 = vpop.f32.mrf.mxu0
    %v1599 = vadd.f32 %v132, %v1598
    %1600 = vmatmul.f32.gmra.mxu0 %v1558
    %v1601 = vpop.f32.mrf.mxu0
    %v1602 = vadd.f32 %v132, %v1601
    %1603 = vmatmul.f32.gmra.mxu0 %v1559
    %v1604 = vpop.f32.mrf.mxu0
    %v1605 = vadd.f32 %v132, %v1604
    %1606 = vmatmul.f32.gmra.mxu0 %v1560
    %v1607 = vpop.f32.mrf.mxu0
    %v1608 = vadd.f32 %v132, %v1607
    %1609 = vmatmul.f32.gmra.mxu0 %v1561
    %v1610 = vpop.f32.mrf.mxu0
    %v1611 = vadd.f32 %v132, %v1610
    %1612 = vmatmul.f32.gmra.mxu0 %v1562
    %v1613 = vpop.f32.mrf.mxu0
    %v1614 = vadd.f32 %v132, %v1613
    %1615 = vdwg.mxu0
    %1616 = vmatpush.msra.mxu0 0.0
    %1617 = vmatpush.msra.mxu0 0.0
    %1618 = vmatpush.msra.mxu0 0.0
    %1619 = vmatpush.msra.mxu0 0.0
    %1620 = vmatpush.msra.mxu0 0.0
    %1621 = vmatpush.msra.mxu0 0.0
    %1622 = vmatpush.msra.mxu0 0.0
    %1623 = vmatpush.msra.mxu0 0.0
    %1624 = vmatpush.msra.mxu0 %v156
    %1625 = vmatpush.msra.mxu0 %v155
    %1626 = vmatpush.msra.mxu0 %v154
    %1627 = vmatpush.msra.mxu0 %v153
    %1628 = vmatpush.msra.mxu0 %v152
    %1629 = vmatpush.msra.mxu0 %v151
    %1630 = vmatpush.msra.mxu0 %v150
    %1631 = vmatpush.msra.mxu0 %v149
    %1632 = vmatmul.f32.gmra.mxu0 %v1564
    %v1633 = vpop.f32.mrf.mxu0
    %v1634 = vadd.f32 %v1599, %v1633
    %1635 = vmatmul.f32.gmra.mxu0 %v1567
    %v1636 = vpop.f32.mrf.mxu0
    %v1637 = vadd.f32 %v1602, %v1636
    %1638 = vmatmul.f32.gmra.mxu0 %v1570
    %v1639 = vpop.f32.mrf.mxu0
    %v1640 = vadd.f32 %v1605, %v1639
    %1641 = vmatmul.f32.gmra.mxu0 %v1573
    %v1642 = vpop.f32.mrf.mxu0
    %v1643 = vadd.f32 %v1608, %v1642
    %1644 = vmatmul.f32.gmra.mxu0 %v1576
    %v1645 = vpop.f32.mrf.mxu0
    %v1646 = vadd.f32 %v1611, %v1645
    %1647 = vmatmul.f32.gmra.mxu0 %v1579
    %v1648 = vpop.f32.mrf.mxu0
    %v1649 = vadd.f32 %v1614, %v1648
    %1650 = vdwg.mxu0
    %1651 = vst [vmem:[%s7 + $0x10] sm:$0xff] %v1634
    %1652 = vst [vmem:[%s7 + $0x18] sm:$0xff] %v1637
    %1653 = vst [vmem:[%s7 + $0x20] sm:$0xff] %v1640
    %1654 = vst [vmem:[%s7 + $0x28] sm:$0xff] %v1643
    %1655 = vst [vmem:[%s7 + $0x30] sm:$0xff] %v1646
    %1656 = vst [vmem:[%s7 + $0x38] sm:$0xff] %v1649
    %v1657 = vsel %vm161, %v1640, %v679
    %v1658 = vsel %vm161, %v1643, %v682
    %v1659 = vld [vmem:[#allocation7] sm:$0xff]
    %v1660 = vld [vmem:[#allocation7 + $0x8] sm:$0xff]
    %v1661 = vld [vmem:[#allocation7 + $0x10] sm:$0xff]
    %v1662 = vld [vmem:[#allocation7 + $0x18] sm:$0xff]
    %v1663 = vld [vmem:[#allocation7 + $0x20] sm:$0xff]
    %v1664 = vld [vmem:[#allocation7 + $0x28] sm:$0xff]
    %v1665 = vld [vmem:[#allocation7 + $0x30] sm:$0xff]
    %v1666 = vld [vmem:[#allocation7 + $0x38] sm:$0xff]
    %v1667 = vld [vmem:[#allocation7 + $0x40] sm:$0xff]
    %v1668 = vld [vmem:[#allocation7 + $0x48] sm:$0xff]
    %v1669 = vld [vmem:[#allocation7 + $0x50] sm:$0xff]
    %v1670 = vld [vmem:[#allocation7 + $0x58] sm:$0xff]
    %v1671 = vld [vmem:[#allocation7 + $0x60] sm:$0xff]
    %v1672 = vld [vmem:[#allocation7 + $0x68] sm:$0xff]
    %v1673 = vld [vmem:[#allocation7 + $0x70] sm:$0xff]
    %v1674 = vld [vmem:[#allocation7 + $0x78] sm:$0xff]
    %v1675 = vld [vmem:[#allocation7 + $0x80] sm:$0xff]
    %v1676 = vld [vmem:[#allocation7 + $0x88] sm:$0xff]
    %v1677 = vld [vmem:[#allocation7 + $0x90] sm:$0xff]
    %v1678 = vld [vmem:[#allocation7 + $0x98] sm:$0xff]
    %v1679 = vld [vmem:[#allocation7 + $0xa0] sm:$0xff]
    %v1680 = vld [vmem:[#allocation7 + $0xa8] sm:$0xff]
    %v1681 = vld [vmem:[#allocation7 + $0xb0] sm:$0xff]
    %v1682 = vld [vmem:[#allocation7 + $0xb8] sm:$0xff]
    %v1683 = vld [vmem:[#allocation7 + $0xc0] sm:$0xff]
    %v1684 = vld [vmem:[#allocation7 + $0xc8] sm:$0xff]
    %v1685 = vld [vmem:[#allocation7 + $0xd0] sm:$0xff]
    %v1686 = vld [vmem:[#allocation7 + $0xd8] sm:$0xff]
    %v1687 = vld [vmem:[#allocation7 + $0xe0] sm:$0xff]
    %v1688 = vld [vmem:[#allocation7 + $0xe8] sm:$0xff]
    %v1689 = vld [vmem:[#allocation7 + $0xf0] sm:$0xff]
    %v1690 = vld [vmem:[#allocation7 + $0xf8] sm:$0xff]
    %v1691 = vld [vmem:[#allocation7 + $0x100] sm:$0xff]
    %v1692 = vld [vmem:[#allocation7 + $0x108] sm:$0xff]
    %v1693 = vld [vmem:[#allocation7 + $0x110] sm:$0xff]
    %v1694 = vld [vmem:[#allocation7 + $0x118] sm:$0xff]
    %v1695 = vld [vmem:[#allocation7 + $0x120] sm:$0xff]
    %v1696 = vld [vmem:[#allocation7 + $0x128] sm:$0xff]
    %v1697 = vld [vmem:[#allocation7 + $0x130] sm:$0xff]
    %v1698 = vld [vmem:[#allocation7 + $0x138] sm:$0xff]
    %v1699 = vld [vmem:[#allocation7 + $0x140] sm:$0xff]
    %v1700 = vld [vmem:[#allocation7 + $0x148] sm:$0xff]
    %v1701 = vld [vmem:[#allocation7 + $0x150] sm:$0xff]
    %v1702 = vld [vmem:[#allocation7 + $0x158] sm:$0xff]
    %v1703 = vld [vmem:[#allocation7 + $0x160] sm:$0xff]
    %v1704 = vld [vmem:[#allocation7 + $0x168] sm:$0xff]
    %v1705 = vld [vmem:[#allocation7 + $0x170] sm:$0xff]
    %v1706 = vld [vmem:[#allocation7 + $0x178] sm:$0xff]
    %v1708 = vsel %vm189, %v1657, 0
    %v1711 = vsel %vm189, %v1658, 0
    %1713 = vmatpush.msra.mxu0 %v1689
    %1714 = vmatpush.msra.mxu0 %v1687
    %1715 = vmatpush.msra.mxu0 %v1685
    %1716 = vmatpush.msra.mxu0 %v1683
    %1717 = vmatpush.msra.mxu0 %v1681
    %1718 = vmatpush.msra.mxu0 %v1679
    %1719 = vmatpush.msra.mxu0 %v1677
    %1720 = vmatpush.msra.mxu0 %v1675
    %1721 = vmatpush.msra.mxu0 %v1673
    %1722 = vmatpush.msra.mxu0 %v1671
    %1723 = vmatpush.msra.mxu0 %v1669
    %1724 = vmatpush.msra.mxu0 %v1667
    %1725 = vmatpush.msra.mxu0 %v1665
    %1726 = vmatpush.msra.mxu0 %v1663
    %1727 = vmatpush.msra.mxu0 %v1661
    %1728 = vmatpush.msra.mxu0 %v1659
    %1729 = vmatmul.f32.gmra.mxu0 0.0
    %v1730 = vpop.f32.mrf.mxu0
    %v1731 = vadd.f32 %v185, %v1730
    %1732 = vmatmul.f32.gmra.mxu0 0.0
    %v1733 = vpop.f32.mrf.mxu0
    %v1734 = vadd.f32 %v185, %v1733
    %1735 = vdwg.mxu0
    %1736 = vmatpush.msra.mxu0 0.0
    %1737 = vmatpush.msra.mxu0 0.0
    %1738 = vmatpush.msra.mxu0 0.0
    %1739 = vmatpush.msra.mxu0 0.0
    %1740 = vmatpush.msra.mxu0 0.0
    %1741 = vmatpush.msra.mxu0 0.0
    %1742 = vmatpush.msra.mxu0 0.0
    %1743 = vmatpush.msra.mxu0 0.0
    %1744 = vmatpush.msra.mxu0 %v1705
    %1745 = vmatpush.msra.mxu0 %v1703
    %1746 = vmatpush.msra.mxu0 %v1701
    %1747 = vmatpush.msra.mxu0 %v1699
    %1748 = vmatpush.msra.mxu0 %v1697
    %1749 = vmatpush.msra.mxu0 %v1695
    %1750 = vmatpush.msra.mxu0 %v1693
    %1751 = vmatpush.msra.mxu0 %v1691
    %1752 = vmatmul.f32.gmra.mxu0 %v1708
    %v1753 = vpop.f32.mrf.mxu0
    %v1754 = vadd.f32 %v1731, %v1753
    %1755 = vmatmul.f32.gmra.mxu0 %v1711
    %v1756 = vpop.f32.mrf.mxu0
    %v1757 = vadd.f32 %v1734, %v1756
    %1758 = vdwg.mxu0
    %1759 = vmatpush.msra.mxu0 %v1690
    %1760 = vmatpush.msra.mxu0 %v1688
    %1761 = vmatpush.msra.mxu0 %v1686
    %1762 = vmatpush.msra.mxu0 %v1684
    %1763 = vmatpush.msra.mxu0 %v1682
    %1764 = vmatpush.msra.mxu0 %v1680
    %1765 = vmatpush.msra.mxu0 %v1678
    %1766 = vmatpush.msra.mxu0 %v1676
    %1767 = vmatpush.msra.mxu0 %v1674
    %1768 = vmatpush.msra.mxu0 %v1672
    %1769 = vmatpush.msra.mxu0 %v1670
    %1770 = vmatpush.msra.mxu0 %v1668
    %1771 = vmatpush.msra.mxu0 %v1666
    %1772 = vmatpush.msra.mxu0 %v1664
    %1773 = vmatpush.msra.mxu0 %v1662
    %1774 = vmatpush.msra.mxu0 %v1660
    %1775 = vmatmul.f32.gmra.mxu0 0.0
    %v1776 = vpop.f32.mrf.mxu0
    %v1777 = vadd.f32 %v186, %v1776
    %1778 = vmatmul.f32.gmra.mxu0 0.0
    %v1779 = vpop.f32.mrf.mxu0
    %v1780 = vadd.f32 %v186, %v1779
    %1781 = vdwg.mxu0
    %1782 = vmatpush.msra.mxu0 0.0
    %1783 = vmatpush.msra.mxu0 0.0
    %1784 = vmatpush.msra.mxu0 0.0
    %1785 = vmatpush.msra.mxu0 0.0
    %1786 = vmatpush.msra.mxu0 0.0
    %1787 = vmatpush.msra.mxu0 0.0
    %1788 = vmatpush.msra.mxu0 0.0
    %1789 = vmatpush.msra.mxu0 0.0
    %1790 = vmatpush.msra.mxu0 %v1706
    %1791 = vmatpush.msra.mxu0 %v1704
    %1792 = vmatpush.msra.mxu0 %v1702
    %1793 = vmatpush.msra.mxu0 %v1700
    %1794 = vmatpush.msra.mxu0 %v1698
    %1795 = vmatpush.msra.mxu0 %v1696
    %1796 = vmatpush.msra.mxu0 %v1694
    %1797 = vmatpush.msra.mxu0 %v1692
    %1798 = vmatmul.f32.gmra.mxu0 %v1708
    %v1799 = vpop.f32.mrf.mxu0
    %v1800 = vadd.f32 %v1777, %v1799
    %1801 = vmatmul.f32.gmra.mxu0 %v1711
    %v1802 = vpop.f32.mrf.mxu0
    %v1803 = vadd.f32 %v1780, %v1802
    %1804 = vdwg.mxu0
    %vm1805 = vcmp.gt.f32.partialorder %v1754, 0.0
    %vm1806 = vcmp.gt.f32.partialorder %v1800, 0.0
    %vm1807 = vcmp.gt.f32.partialorder %v1757, 0.0
    %vm1808 = vcmp.gt.f32.partialorder %v1803, 0.0
    %v1809 = vmul.f32 %v1754, 0.2
    %v1810 = vmul.f32 %v1800, 0.2
    %v1811 = vmul.f32 %v1757, 0.2
    %v1812 = vmul.f32 %v1803, 0.2
    %v1813 = vsel %vm1805, %v1754, %v1809
    %v1814 = vsel %vm1806, %v1800, %v1810
    %v1815 = vsel %vm1807, %v1757, %v1811
    %v1816 = vsel %vm1808, %v1803, %v1812
    %v1817 = vld [vmem:[#allocation9] sm:$0xff]
    %v1818 = vld [vmem:[#allocation9 + $0x8] sm:$0xff]
    %v1819 = vld [vmem:[#allocation9 + $0x10] sm:$0xff]
    %v1820 = vld [vmem:[#allocation9 + $0x18] sm:$0xff]
    %v1821 = vld [vmem:[#allocation9 + $0x20] sm:$0xff]
    %v1822 = vld [vmem:[#allocation9 + $0x28] sm:$0xff]
    %v1823 = vld [vmem:[#allocation9 + $0x30] sm:$0xff]
    %v1824 = vld [vmem:[#allocation9 + $0x38] sm:$0xff]
    %v1825 = vld [vmem:[#allocation9 + $0x40] sm:$0xff]
    %v1826 = vld [vmem:[#allocation9 + $0x48] sm:$0xff]
    %v1827 = vld [vmem:[#allocation9 + $0x50] sm:$0xff]
    %v1828 = vld [vmem:[#allocation9 + $0x58] sm:$0xff]
    %v1829 = vld [vmem:[#allocation9 + $0x60] sm:$0xff]
    %v1830 = vld [vmem:[#allocation9 + $0x68] sm:$0xff]
    %v1831 = vld [vmem:[#allocation9 + $0x70] sm:$0xff]
    %v1832 = vld [vmem:[#allocation9 + $0x78] sm:$0xff]
    %v1833 = vld [vmem:[#allocation9 + $0x80] sm:$0xff]
    %v1834 = vld [vmem:[#allocation9 + $0x88] sm:$0xff]
    %v1835 = vld [vmem:[#allocation9 + $0x90] sm:$0xff]
    %v1836 = vld [vmem:[#allocation9 + $0x98] sm:$0xff]
    %v1837 = vld [vmem:[#allocation9 + $0xa0] sm:$0xff]
    %v1838 = vld [vmem:[#allocation9 + $0xa8] sm:$0xff]
    %v1839 = vld [vmem:[#allocation9 + $0xb0] sm:$0xff]
    %v1840 = vld [vmem:[#allocation9 + $0xb8] sm:$0xff]
    %v1841 = vld [vmem:[#allocation9 + $0xc0] sm:$0xff]
    %v1842 = vld [vmem:[#allocation9 + $0xc8] sm:$0xff]
    %v1843 = vld [vmem:[#allocation9 + $0xd0] sm:$0xff]
    %v1844 = vld [vmem:[#allocation9 + $0xd8] sm:$0xff]
    %v1845 = vld [vmem:[#allocation9 + $0xe0] sm:$0xff]
    %v1846 = vld [vmem:[#allocation9 + $0xe8] sm:$0xff]
    %v1847 = vld [vmem:[#allocation9 + $0xf0] sm:$0xff]
    %v1848 = vld [vmem:[#allocation9 + $0xf8] sm:$0xff]
    %v1849 = vld [vmem:[#allocation9 + $0x100] sm:$0xff]
    %v1850 = vld [vmem:[#allocation9 + $0x108] sm:$0xff]
    %v1851 = vld [vmem:[#allocation9 + $0x110] sm:$0xff]
    %v1852 = vld [vmem:[#allocation9 + $0x118] sm:$0xff]
    %v1853 = vld [vmem:[#allocation9 + $0x120] sm:$0xff]
    %v1854 = vld [vmem:[#allocation9 + $0x128] sm:$0xff]
    %v1855 = vld [vmem:[#allocation9 + $0x130] sm:$0xff]
    %v1856 = vld [vmem:[#allocation9 + $0x138] sm:$0xff]
    %v1857 = vld [vmem:[#allocation9 + $0x140] sm:$0xff]
    %v1858 = vld [vmem:[#allocation9 + $0x148] sm:$0xff]
    %v1859 = vld [vmem:[#allocation9 + $0x150] sm:$0xff]
    %v1860 = vld [vmem:[#allocation9 + $0x158] sm:$0xff]
    %v1861 = vld [vmem:[#allocation9 + $0x160] sm:$0xff]
    %v1862 = vld [vmem:[#allocation9 + $0x168] sm:$0xff]
    %v1863 = vld [vmem:[#allocation9 + $0x170] sm:$0xff]
    %v1864 = vld [vmem:[#allocation9 + $0x178] sm:$0xff]
    %v1865 = vld [vmem:[%s302] ss:$8 sm:$0x3]
    %v1867 = vperm.slane %v1865, 0
    %v1868 = vperm.slane %v1865, 1
    %v1872 = vsel %vm189, %v1814, 0
    %v1875 = vsel %vm189, %v1816, 0
    %1877 = vmatpush.msra.mxu0 %v1847
    %1878 = vmatpush.msra.mxu0 %v1845
    %1879 = vmatpush.msra.mxu0 %v1843
    %1880 = vmatpush.msra.mxu0 %v1841
    %1881 = vmatpush.msra.mxu0 %v1839
    %1882 = vmatpush.msra.mxu0 %v1837
    %1883 = vmatpush.msra.mxu0 %v1835
    %1884 = vmatpush.msra.mxu0 %v1833
    %1885 = vmatpush.msra.mxu0 %v1831
    %1886 = vmatpush.msra.mxu0 %v1829
    %1887 = vmatpush.msra.mxu0 %v1827
    %1888 = vmatpush.msra.mxu0 %v1825
    %1889 = vmatpush.msra.mxu0 %v1823
    %1890 = vmatpush.msra.mxu0 %v1821
    %1891 = vmatpush.msra.mxu0 %v1819
    %1892 = vmatpush.msra.mxu0 %v1817
    %1893 = vmatmul.f32.gmra.mxu0 %v1813
    %v1894 = vpop.f32.mrf.mxu0
    %v1895 = vadd.f32 %v1867, %v1894
    %1896 = vmatmul.f32.gmra.mxu0 %v1815
    %v1897 = vpop.f32.mrf.mxu0
    %v1898 = vadd.f32 %v1867, %v1897
    %1899 = vdwg.mxu0
    %1900 = vmatpush.msra.mxu0 0.0
    %1901 = vmatpush.msra.mxu0 0.0
    %1902 = vmatpush.msra.mxu0 0.0
    %1903 = vmatpush.msra.mxu0 0.0
    %1904 = vmatpush.msra.mxu0 0.0
    %1905 = vmatpush.msra.mxu0 0.0
    %1906 = vmatpush.msra.mxu0 0.0
    %1907 = vmatpush.msra.mxu0 0.0
    %1908 = vmatpush.msra.mxu0 %v1863
    %1909 = vmatpush.msra.mxu0 %v1861
    %1910 = vmatpush.msra.mxu0 %v1859
    %1911 = vmatpush.msra.mxu0 %v1857
    %1912 = vmatpush.msra.mxu0 %v1855
    %1913 = vmatpush.msra.mxu0 %v1853
    %1914 = vmatpush.msra.mxu0 %v1851
    %1915 = vmatpush.msra.mxu0 %v1849
    %1916 = vmatmul.f32.gmra.mxu0 %v1872
    %v1917 = vpop.f32.mrf.mxu0
    %v1918 = vadd.f32 %v1895, %v1917
    %1919 = vmatmul.f32.gmra.mxu0 %v1875
    %v1920 = vpop.f32.mrf.mxu0
    %v1921 = vadd.f32 %v1898, %v1920
    %1922 = vdwg.mxu0
    %1923 = vmatpush.msra.mxu0 %v1848
    %1924 = vmatpush.msra.mxu0 %v1846
    %1925 = vmatpush.msra.mxu0 %v1844
    %1926 = vmatpush.msra.mxu0 %v1842
    %1927 = vmatpush.msra.mxu0 %v1840
    %1928 = vmatpush.msra.mxu0 %v1838
    %1929 = vmatpush.msra.mxu0 %v1836
    %1930 = vmatpush.msra.mxu0 %v1834
    %1931 = vmatpush.msra.mxu0 %v1832
    %1932 = vmatpush.msra.mxu0 %v1830
    %1933 = vmatpush.msra.mxu0 %v1828
    %1934 = vmatpush.msra.mxu0 %v1826
    %1935 = vmatpush.msra.mxu0 %v1824
    %1936 = vmatpush.msra.mxu0 %v1822
    %1937 = vmatpush.msra.mxu0 %v1820
    %1938 = vmatpush.msra.mxu0 %v1818
    %1939 = vmatmul.f32.gmra.mxu0 %v1813
    %v1940 = vpop.f32.mrf.mxu0
    %v1941 = vadd.f32 %v1868, %v1940
    %1942 = vmatmul.f32.gmra.mxu0 %v1815
    %v1943 = vpop.f32.mrf.mxu0
    %v1944 = vadd.f32 %v1868, %v1943
    %1945 = vdwg.mxu0
    %1946 = vmatpush.msra.mxu0 0.0
    %1947 = vmatpush.msra.mxu0 0.0
    %1948 = vmatpush.msra.mxu0 0.0
    %1949 = vmatpush.msra.mxu0 0.0
    %1950 = vmatpush.msra.mxu0 0.0
    %1951 = vmatpush.msra.mxu0 0.0
    %1952 = vmatpush.msra.mxu0 0.0
    %1953 = vmatpush.msra.mxu0 0.0
    %1954 = vmatpush.msra.mxu0 %v1864
    %1955 = vmatpush.msra.mxu0 %v1862
    %1956 = vmatpush.msra.mxu0 %v1860
    %1957 = vmatpush.msra.mxu0 %v1858
    %1958 = vmatpush.msra.mxu0 %v1856
    %1959 = vmatpush.msra.mxu0 %v1854
    %1960 = vmatpush.msra.mxu0 %v1852
    %1961 = vmatpush.msra.mxu0 %v1850
    %1962 = vmatmul.f32.gmra.mxu0 %v1872
    %v1963 = vpop.f32.mrf.mxu0
    %v1964 = vadd.f32 %v1941, %v1963
    %1965 = vmatmul.f32.gmra.mxu0 %v1875
    %v1966 = vpop.f32.mrf.mxu0
    %v1967 = vadd.f32 %v1944, %v1966
    %1968 = vdwg.mxu0
    %vm1969 = vcmp.gt.f32.partialorder %v1918, 0.0
    %vm1970 = vcmp.gt.f32.partialorder %v1964, 0.0
    %vm1971 = vcmp.gt.f32.partialorder %v1921, 0.0
    %vm1972 = vcmp.gt.f32.partialorder %v1967, 0.0
    %v1973 = vmul.f32 %v1918, 0.2
    %v1974 = vmul.f32 %v1964, 0.2
    %v1975 = vmul.f32 %v1921, 0.2
    %v1976 = vmul.f32 %v1967, 0.2
    %v1977 = vsel %vm1969, %v1918, %v1973
    %v1978 = vsel %vm1970, %v1964, %v1974
    %v1979 = vsel %vm1971, %v1921, %v1975
    %v1980 = vsel %vm1972, %v1967, %v1976
    %v1981 = vld [vmem:[%s419] sm:$0xff]
    %v1982 = vld [vmem:[%s419 + $0x8] sm:$0xff]
    %v1983 = vld [vmem:[%s419 + $0x10] sm:$0xff]
    %v1984 = vld [vmem:[%s419 + $0x18] sm:$0xff]
    %v1985 = vld [vmem:[%s419 + $0x20] sm:$0xff]
    %v1986 = vld [vmem:[%s419 + $0x28] sm:$0xff]
    %v1987 = vld [vmem:[%s419 + $0x30] sm:$0xff]
    %v1988 = vld [vmem:[%s419 + $0x38] sm:$0xff]
    %v1989 = vld [vmem:[%s419 + $0x40] sm:$0xff]
    %v1990 = vld [vmem:[%s419 + $0x48] sm:$0xff]
    %v1991 = vld [vmem:[%s419 + $0x50] sm:$0xff]
    %v1992 = vld [vmem:[%s419 + $0x58] sm:$0xff]
    %v1993 = vld [vmem:[%s419 + $0x60] sm:$0xff]
    %v1994 = vld [vmem:[%s419 + $0x68] sm:$0xff]
    %v1995 = vld [vmem:[%s419 + $0x70] sm:$0xff]
    %v1996 = vld [vmem:[%s419 + $0x78] sm:$0xff]
    %v1997 = vld [vmem:[%s419 + $0x80] sm:$0xff]
    %v1998 = vld [vmem:[%s419 + $0x88] sm:$0xff]
    %v1999 = vld [vmem:[%s419 + $0x90] sm:$0xff]
    %v2000 = vld [vmem:[%s419 + $0x98] sm:$0xff]
    %v2001 = vld [vmem:[%s419 + $0xa0] sm:$0xff]
    %v2002 = vld [vmem:[%s419 + $0xa8] sm:$0xff]
    %v2003 = vld [vmem:[%s419 + $0xb0] sm:$0xff]
    %v2004 = vld [vmem:[%s419 + $0xb8] sm:$0xff]
    %v2005 = vld [vmem:[%s419 + $0xc0] sm:$0xff]
    %v2006 = vld [vmem:[%s419 + $0xc8] sm:$0xff]
    %v2007 = vld [vmem:[%s419 + $0xd0] sm:$0xff]
    %v2008 = vld [vmem:[%s419 + $0xd8] sm:$0xff]
    %v2009 = vld [vmem:[%s419 + $0xe0] sm:$0xff]
    %v2010 = vld [vmem:[%s419 + $0xe8] sm:$0xff]
    %v2011 = vld [vmem:[%s419 + $0xf0] sm:$0xff]
    %v2012 = vld [vmem:[%s419 + $0xf8] sm:$0xff]
    %v2013 = vld [vmem:[%s419 + $0x100] sm:$0xff]
    %v2014 = vld [vmem:[%s419 + $0x108] sm:$0xff]
    %v2015 = vld [vmem:[%s419 + $0x110] sm:$0xff]
    %v2016 = vld [vmem:[%s419 + $0x118] sm:$0xff]
    %v2017 = vld [vmem:[%s419 + $0x120] sm:$0xff]
    %v2018 = vld [vmem:[%s419 + $0x128] sm:$0xff]
    %v2019 = vld [vmem:[%s419 + $0x130] sm:$0xff]
    %v2020 = vld [vmem:[%s419 + $0x138] sm:$0xff]
    %v2021 = vld [vmem:[%s419 + $0x140] sm:$0xff]
    %v2022 = vld [vmem:[%s419 + $0x148] sm:$0xff]
    %v2023 = vld [vmem:[%s419 + $0x150] sm:$0xff]
    %v2024 = vld [vmem:[%s419 + $0x158] sm:$0xff]
    %v2025 = vld [vmem:[%s419 + $0x160] sm:$0xff]
    %v2026 = vld [vmem:[%s419 + $0x168] sm:$0xff]
    %v2027 = vld [vmem:[%s419 + $0x170] sm:$0xff]
    %v2028 = vld [vmem:[%s419 + $0x178] sm:$0xff]
    %v2029 = vld [vmem:[%s468] ss:$8 sm:$0x3]
    %v2031 = vperm.slane %v2029, 0
    %v2032 = vperm.slane %v2029, 1
    %v2036 = vsel %vm189, %v1978, 0
    %v2039 = vsel %vm189, %v1980, 0
    %2041 = vmatpush.msra.mxu0 %v2011
    %2042 = vmatpush.msra.mxu0 %v2009
    %2043 = vmatpush.msra.mxu0 %v2007
    %2044 = vmatpush.msra.mxu0 %v2005
    %2045 = vmatpush.msra.mxu0 %v2003
    %2046 = vmatpush.msra.mxu0 %v2001
    %2047 = vmatpush.msra.mxu0 %v1999
    %2048 = vmatpush.msra.mxu0 %v1997
    %2049 = vmatpush.msra.mxu0 %v1995
    %2050 = vmatpush.msra.mxu0 %v1993
    %2051 = vmatpush.msra.mxu0 %v1991
    %2052 = vmatpush.msra.mxu0 %v1989
    %2053 = vmatpush.msra.mxu0 %v1987
    %2054 = vmatpush.msra.mxu0 %v1985
    %2055 = vmatpush.msra.mxu0 %v1983
    %2056 = vmatpush.msra.mxu0 %v1981
    %2057 = vmatmul.f32.gmra.mxu0 %v1977
    %v2058 = vpop.f32.mrf.mxu0
    %v2059 = vadd.f32 %v2031, %v2058
    %2060 = vmatmul.f32.gmra.mxu0 %v1979
    %v2061 = vpop.f32.mrf.mxu0
    %v2062 = vadd.f32 %v2031, %v2061
    %2063 = vdwg.mxu0
    %2064 = vmatpush.msra.mxu0 0.0
    %2065 = vmatpush.msra.mxu0 0.0
    %2066 = vmatpush.msra.mxu0 0.0
    %2067 = vmatpush.msra.mxu0 0.0
    %2068 = vmatpush.msra.mxu0 0.0
    %2069 = vmatpush.msra.mxu0 0.0
    %2070 = vmatpush.msra.mxu0 0.0
    %2071 = vmatpush.msra.mxu0 0.0
    %2072 = vmatpush.msra.mxu0 %v2027
    %2073 = vmatpush.msra.mxu0 %v2025
    %2074 = vmatpush.msra.mxu0 %v2023
    %2075 = vmatpush.msra.mxu0 %v2021
    %2076 = vmatpush.msra.mxu0 %v2019
    %2077 = vmatpush.msra.mxu0 %v2017
    %2078 = vmatpush.msra.mxu0 %v2015
    %2079 = vmatpush.msra.mxu0 %v2013
    %2080 = vmatmul.f32.gmra.mxu0 %v2036
    %v2081 = vpop.f32.mrf.mxu0
    %v2082 = vadd.f32 %v2059, %v2081
    %2083 = vmatmul.f32.gmra.mxu0 %v2039
    %v2084 = vpop.f32.mrf.mxu0
    %v2085 = vadd.f32 %v2062, %v2084
    %2086 = vdwg.mxu0
    %2087 = vmatpush.msra.mxu0 %v2012
    %2088 = vmatpush.msra.mxu0 %v2010
    %2089 = vmatpush.msra.mxu0 %v2008
    %2090 = vmatpush.msra.mxu0 %v2006
    %2091 = vmatpush.msra.mxu0 %v2004
    %2092 = vmatpush.msra.mxu0 %v2002
    %2093 = vmatpush.msra.mxu0 %v2000
    %2094 = vmatpush.msra.mxu0 %v1998
    %2095 = vmatpush.msra.mxu0 %v1996
    %2096 = vmatpush.msra.mxu0 %v1994
    %2097 = vmatpush.msra.mxu0 %v1992
    %2098 = vmatpush.msra.mxu0 %v1990
    %2099 = vmatpush.msra.mxu0 %v1988
    %2100 = vmatpush.msra.mxu0 %v1986
    %2101 = vmatpush.msra.mxu0 %v1984
    %2102 = vmatpush.msra.mxu0 %v1982
    %2103 = vmatmul.f32.gmra.mxu0 %v1977
    %v2104 = vpop.f32.mrf.mxu0
    %v2105 = vadd.f32 %v2032, %v2104
    %2106 = vmatmul.f32.gmra.mxu0 %v1979
    %v2107 = vpop.f32.mrf.mxu0
    %v2108 = vadd.f32 %v2032, %v2107
    %2109 = vdwg.mxu0
    %2110 = vmatpush.msra.mxu0 0.0
    %2111 = vmatpush.msra.mxu0 0.0
    %2112 = vmatpush.msra.mxu0 0.0
    %2113 = vmatpush.msra.mxu0 0.0
    %2114 = vmatpush.msra.mxu0 0.0
    %2115 = vmatpush.msra.mxu0 0.0
    %2116 = vmatpush.msra.mxu0 0.0
    %2117 = vmatpush.msra.mxu0 0.0
    %2118 = vmatpush.msra.mxu0 %v2028
    %2119 = vmatpush.msra.mxu0 %v2026
    %2120 = vmatpush.msra.mxu0 %v2024
    %2121 = vmatpush.msra.mxu0 %v2022
    %2122 = vmatpush.msra.mxu0 %v2020
    %2123 = vmatpush.msra.mxu0 %v2018
    %2124 = vmatpush.msra.mxu0 %v2016
    %2125 = vmatpush.msra.mxu0 %v2014
    %2126 = vmatmul.f32.gmra.mxu0 %v2036
    %v2127 = vpop.f32.mrf.mxu0
    %v2128 = vadd.f32 %v2105, %v2127
    %2129 = vmatmul.f32.gmra.mxu0 %v2039
    %v2130 = vpop.f32.mrf.mxu0
    %v2131 = vadd.f32 %v2108, %v2130
    %2132 = vdwg.mxu0
    %vm2133 = vcmp.gt.f32.partialorder %v2082, 0.0
    %vm2134 = vcmp.gt.f32.partialorder %v2128, 0.0
    %vm2135 = vcmp.gt.f32.partialorder %v2085, 0.0
    %vm2136 = vcmp.gt.f32.partialorder %v2131, 0.0
    %v2137 = vmul.f32 %v2082, 0.2
    %v2138 = vmul.f32 %v2128, 0.2
    %v2139 = vmul.f32 %v2085, 0.2
    %v2140 = vmul.f32 %v2131, 0.2
    %v2141 = vsel %vm2133, %v2082, %v2137
    %v2142 = vsel %vm2134, %v2128, %v2138
    %v2143 = vsel %vm2135, %v2085, %v2139
    %v2144 = vsel %vm2136, %v2131, %v2140
    %v2146 = vsel %vm189, %v2142, 0
    %v2149 = vsel %vm189, %v2144, 0
    %2151 = vmatpush.msra.mxu0 %v148
    %2152 = vmatpush.msra.mxu0 %v147
    %2153 = vmatpush.msra.mxu0 %v146
    %2154 = vmatpush.msra.mxu0 %v145
    %2155 = vmatpush.msra.mxu0 %v144
    %2156 = vmatpush.msra.mxu0 %v143
    %2157 = vmatpush.msra.mxu0 %v142
    %2158 = vmatpush.msra.mxu0 %v141
    %2159 = vmatpush.msra.mxu0 %v140
    %2160 = vmatpush.msra.mxu0 %v139
    %2161 = vmatpush.msra.mxu0 %v138
    %2162 = vmatpush.msra.mxu0 %v137
    %2163 = vmatpush.msra.mxu0 %v136
    %2164 = vmatpush.msra.mxu0 %v135
    %2165 = vmatpush.msra.mxu0 %v134
    %2166 = vmatpush.msra.mxu0 %v133
    %2167 = vmatmul.f32.gmra.mxu0 %v2141
    %v2168 = vpop.f32.mrf.mxu0
    %v2169 = vadd.f32 %v132, %v2168
    %2170 = vmatmul.f32.gmra.mxu0 %v2143
    %v2171 = vpop.f32.mrf.mxu0
    %v2172 = vadd.f32 %v132, %v2171
    %2173 = vdwg.mxu0
    %2174 = vmatpush.msra.mxu0 0.0
    %2175 = vmatpush.msra.mxu0 0.0
    %2176 = vmatpush.msra.mxu0 0.0
    %2177 = vmatpush.msra.mxu0 0.0
    %2178 = vmatpush.msra.mxu0 0.0
    %2179 = vmatpush.msra.mxu0 0.0
    %2180 = vmatpush.msra.mxu0 0.0
    %2181 = vmatpush.msra.mxu0 0.0
    %2182 = vmatpush.msra.mxu0 %v156
    %2183 = vmatpush.msra.mxu0 %v155
    %2184 = vmatpush.msra.mxu0 %v154
    %2185 = vmatpush.msra.mxu0 %v153
    %2186 = vmatpush.msra.mxu0 %v152
    %2187 = vmatpush.msra.mxu0 %v151
    %2188 = vmatpush.msra.mxu0 %v150
    %2189 = vmatpush.msra.mxu0 %v149
    %2190 = vmatmul.f32.gmra.mxu0 %v2146
    %v2191 = vpop.f32.mrf.mxu0
    %v2192 = vadd.f32 %v2169, %v2191
    %2193 = vmatmul.f32.gmra.mxu0 %v2149
    %v2194 = vpop.f32.mrf.mxu0
    %v2195 = vadd.f32 %v2172, %v2194
    %2196 = vdwg.mxu0
    %2197 = vst [vmem:[%s7 + $0x40] sm:$0xff] %v2192
    %2198 = vst [vmem:[%s7 + $0x48] sm:$0xff] %v2195
    // Predicated region
    $region58: #{setops_forward.1} parent=1 // pred_check
      _
    $region59: #{setops_forward.1} parent=1 // pred_check_branch
      %2200 = sbr.rel (0) target = $region61
    $region60: #{setops_forward.1} parent=1 // pred_region
      _
    $region61: #{setops_forward.1} parent=1 // pred_fallthru
      _
    // Predicated region
    $region62: #{setops_forward.1} parent=1 // pred_check
      _
    $region63: #{setops_forward.1} parent=1 // pred_check_branch
      %2202 = sbr.rel (0) target = $region65
    $region64: #{setops_forward.1} parent=1 // pred_region
      _
    $region65: #{setops_forward.1} parent=1 // pred_fallthru
      _
    %2203 = vsyncpa [#allocation3], 1
    %2204 = vsyncpa [#allocation5], 1
    %2205 = vsyncpa [#allocation8], 1
    %2206 = vsyncpa [#allocation11], 1

</llo_original>
